<compile_context>
chip_gen: v7x
topology: tpu7x:2x2x1
jax: 0.10.0
libtpu: 0.0.40
codegen_flags: <defaults>
</compile_context>

<pallas_src>
import math

import jax
import jax.numpy as jnp
from jax.experimental import pallas as pl
from jax.experimental.pallas import tpu as pltpu

FEAT_DIM = 128      # feat_dim (module default is 400; lane-aligned choice kept from v1)
INTER_DIM = 512     # hardcoded intermediate_feat_dim in the module
HEAD_HID = 256
N_OFF = 4
N_ACT = 8
OUT_PAD = 128       # lane-dense padded width for the combined head output
EPS = 1e-5


def _round_up(x, m):
    return (x + m - 1) // m * m


def _tiling_config():
    """Pick block sizes / VMEM cap from the part: 128 MiB VMEM (v5e/v6e) vs 64 MiB (v7x)."""
    try:
        cap = int(pltpu.get_tpu_info().vmem_capacity_bytes)
    except Exception:
        cap = 64 * 1024 * 1024
    if cap >= 96 * 1024 * 1024:   # v5e / v6e: big VMEM -> big blocks, amortize per-step cost
        return dict(k_block=4096, rows_max=512, vmem_limit=64 * 1024 * 1024)
    return dict(k_block=2048, rows_max=256, vmem_limit=32 * 1024 * 1024)   # v7x


def _choose_row_tile(rows, V, rows_max):
    """Rows (= B*V, view-minor) per grid step.  TR is a multiple of 8*V so a block never
    splits a batch's views and TR//V stays sublane-aligned; aim for >= 2 row blocks so the
    'parallel' axis can feed both v7x TensorCores."""
    unit = 8 * V
    if rows <= unit:
        return rows                                   # single full-extent row block
    cap = max(unit, (rows_max // unit) * unit)
    half = max(unit, (((rows + 1) // 2) // unit) * unit)
    return min(cap, half)


# ----------------------------- in-kernel helpers -----------------------------
def _silu(x):
    # sigmoid = reciprocal(1 + exp(-x)); exp -> EUP, approx reciprocal -> EUP slot.
    return x * pl.reciprocal(1.0 + jnp.exp(-x), approx=True)


def _layernorm(x):
    # LayerNorm without affine: gamma/beta are folded into the following Linear.
    mu = jnp.mean(x, axis=-1, keepdims=True)
    var = jnp.mean(jnp.square(x - mu), axis=-1, keepdims=True)
    return (x - mu) * jax.lax.rsqrt(var + EPS)


# ------------------------------- fused kernel --------------------------------
def make_fused_kernel(V, TB):
    def kernel(x_ref, wb_ref, bb_ref,
               w_in_ref, bi_in_ref, w1_ref, b1_ref, w2_ref, b2_ref,
               aux_ref, logits_ref):
        k = pl.program_id(1)

        # Backbone matmul for all V*TB rows of this block at once.  x is read as f32 and
        # cast to bf16 in VMEM; f32 accumulation goes directly into the resident aux
        # output block (index_map ignores k) -> no scratch, no zero-init pass.
        part = jnp.dot(x_ref[...].astype(jnp.bfloat16), wb_ref[...],
                       preferred_element_type=jnp.float32)

        @pl.when(k == 0)
        def _first():
            aux_ref[...] = part

        @pl.when(k > 0)
        def _accum():
            aux_ref[...] = aux_ref[...] + part

        @pl.when(k == pl.num_programs(1) - 1)
        def _finalize():
            # Finish the backbone: add bias in place; aux now holds per-view features.
            aux_ref[...] = aux_ref[...] + bb_ref[...]

            # Max over the V view-rows of each batch.  Rows are batch-major / view-minor,
            # so view v of every batch in this block is a stride-V sublane read.
            if V == 1:
                pooled = aux_ref[...]
            else:
                pooled = aux_ref[pl.ds(0, TB, stride=V), :]
                for v in range(1, V):
                    pooled = jnp.maximum(pooled, aux_ref[pl.ds(v, TB, stride=V), :])

            # inter: LayerNorm (affine folded into w_in) -> Linear -> SiLU -> Dropout(id)
            h = _silu(jnp.dot(_layernorm(pooled), w_in_ref[...].astype(jnp.float32),
                              preferred_element_type=jnp.float32) + bi_in_ref[...])
            # both heads, stage 1: shared plain-LN, affine folded, concatenated weight
            z = _silu(jnp.dot(_layernorm(h), w1_ref[...].astype(jnp.float32),
                              preferred_element_type=jnp.float32) + b1_ref[...])
            # stage 2: combined zero-padded (512, 128) weight -> lane-dense logits block
            logits_ref[...] = (jnp.dot(z, w2_ref[...].astype(jnp.float32),
                                       preferred_element_type=jnp.float32)
                               + b2_ref[...]).astype(logits_ref.dtype)
    return kernel


# --------------------------------- forward -----------------------------------
def mv_aggregate_forward(mvimages, prep):
    B, V, C, D, H, W = mvimages.shape
    F_in = C * D * H * W
    feat = prep["bb"].shape[-1]
    cfg = _tiling_config()

    rows = B * V
    # Zero-copy view of the input: (B, V, C, D, H, W) -> (B*V, F_in), batch-major /
    # view-minor rows.  No transpose / dtype-cast round trip of the dominant tensor.
    x2 = mvimages.reshape(rows, F_in)

    # --- K (flattened-feature) tiling; pad only at lane granularity when tiling ---
    F_al = _round_up(F_in, 128)
    if F_al <= cfg["k_block"]:
        nk, TK, F_eff = 1, F_in, F_in                  # full-dim K block: no pad at all
    else:
        nk = pl.cdiv(F_al, cfg["k_block"])
        TK = _round_up(pl.cdiv(F_al, nk), 128)
        F_eff = nk * TK
    wb = prep["wb"]
    if F_eff != F_in:
        # Only hit when F needs K-tiling and is not already TK-aligned.
        x2 = jnp.pad(x2, ((0, 0), (0, F_eff - F_in)))
        wb = jnp.pad(wb, ((0, F_eff - F_in), (0, 0)))

    # --- row tiling (batch*view rows) ---
    TR = _choose_row_tile(rows, V, cfg["rows_max"])
    TB = TR // V                                       # batches per row block
    n_r = pl.cdiv(rows, TR)

    kernel = make_fused_kernel(V, TB)

    aux_flat, logits = pl.pallas_call(
        kernel,
        out_shape=(jax.ShapeDtypeStruct((rows, feat), jnp.float32),
                   jax.ShapeDtypeStruct((B, OUT_PAD), jnp.float32)),
        grid_spec=pltpu.PrefetchScalarGridSpec(
            num_scalar_prefetch=0,
            grid=(n_r, nk),                                            # reduction axis last
            in_specs=[
                pl.BlockSpec((TR, TK), lambda r, k: (r, k)),            # x (f32, native)
                pl.BlockSpec((TK, feat), lambda r, k: (k, 0)),          # backbone W (bf16)
                pl.BlockSpec((1, feat), lambda r, k: (0, 0)),           # backbone bias
                pl.BlockSpec((feat, INTER_DIM), lambda r, k: (0, 0)),   # w_in (bf16, folded)
                pl.BlockSpec((1, INTER_DIM), lambda r, k: (0, 0)),      # b_in (folded)
                pl.BlockSpec((INTER_DIM, 2 * HEAD_HID), lambda r, k: (0, 0)),  # w1 (bf16)
                pl.BlockSpec((1, 2 * HEAD_HID), lambda r, k: (0, 0)),          # b1
                pl.BlockSpec((2 * HEAD_HID, OUT_PAD), lambda r, k: (0, 0)),    # w2 (bf16)
                pl.BlockSpec((1, OUT_PAD), lambda r, k: (0, 0)),               # b2
            ],
            out_specs=[
                pl.BlockSpec((TR, feat), lambda r, k: (r, 0)),          # aux / f32 accumulator
                pl.BlockSpec((TB, OUT_PAD), lambda r, k: (r, 0)),       # padded logits
            ],
        ),
        compiler_params=pltpu.CompilerParams(
            dimension_semantics=("parallel", "arbitrary"),
            vmem_limit_bytes=cfg["vmem_limit"],
        ),
    )(x2, wb, prep["bb"], prep["w_in"], prep["bi_in"],
      prep["w1"], prep["b1"], prep["w2"], prep["b2"])

    aux = aux_flat.reshape(B, V, feat)                 # (B, V, feat), free reshape
    off = logits[:, :N_OFF]
    act = logits[:, N_OFF:N_OFF + N_ACT]
    if B == 1:
        # mimic torch's pooled_view.squeeze() with B==1 on the returned logits only
        off, act = off[0], act[0]
    return off, act, aux


# ------------------------ parameter init & wrapper prep ----------------------
def init_params(key, f_in):
    def linear(k, fan_in, fan_out):
        kw, kb = jax.random.split(k)
        bound = 1.0 / math.sqrt(fan_in)
        w = jax.random.uniform(kw, (fan_in, fan_out), jnp.float32, -bound, bound)
        b = jax.random.uniform(kb, (1, fan_out), jnp.float32, -bound, bound)
        return w, b

    def ln_affine(k, dim):
        # non-trivial gamma/beta (as in a trained model) to exercise the folding math
        kg, kb = jax.random.split(k)
        g = 1.0 + 0.1 * jax.random.uniform(kg, (1, dim), jnp.float32, -1.0, 1.0)
        b = 0.1 * jax.random.uniform(kb, (1, dim), jnp.float32, -1.0, 1.0)
        return g, b

    ks = jax.random.split(key, 9)
    p = {}
    p["w_backbone"], p["b_backbone"] = linear(ks[0], f_in, FEAT_DIM)
    p["g_in"], p["b_in"] = ln_affine(ks[1], FEAT_DIM)
    p["w_in"], p["bi_in"] = linear(ks[2], FEAT_DIM, INTER_DIM)
    p["g_off"], p["b_off"] = ln_affine(ks[3], INTER_DIM)
    p["w_off1"], p["bi_off1"] = linear(ks[4], INTER_DIM, HEAD_HID)
    p["w_off2"], p["bi_off2"] = linear(ks[5], HEAD_HID, N_OFF)
    p["g_act"], p["b_act"] = ln_affine(ks[6], INTER_DIM)
    p["w_act1"], p["bi_act1"] = linear(ks[7], INTER_DIM, HEAD_HID)
    p["w_act2"], p["bi_act2"] = linear(ks[8], HEAD_HID, N_ACT)
    return p


def prepare_params(p):
    """Wrapper-side algebra: fold LN affines into Linears, concat/pad head weights.
    Weight matrices stored bf16 (upcast in-kernel); biases stay f32."""
    hp = jax.lax.Precision.HIGHEST
    prep = {}
    prep["wb"] = p["w_backbone"].astype(jnp.bfloat16)
    prep["bb"] = p["b_backbone"]

    # inter: LN(gamma,beta) -> Linear   ==>   plain-LN -> Linear(diag(g)@W, beta@W + b)
    prep["w_in"] = (p["g_in"][0][:, None] * p["w_in"]).astype(jnp.bfloat16)
    prep["bi_in"] = jnp.matmul(p["b_in"], p["w_in"], precision=hp) + p["bi_in"]

    w_off1 = p["g_off"][0][:, None] * p["w_off1"]
    bi_off1 = jnp.matmul(p["b_off"], p["w_off1"], precision=hp) + p["bi_off1"]
    w_act1 = p["g_act"][0][:, None] * p["w_act1"]
    bi_act1 = jnp.matmul(p["b_act"], p["w_act1"], precision=hp) + p["bi_act1"]
    prep["w1"] = jnp.concatenate([w_off1, w_act1], axis=1).astype(jnp.bfloat16)  # (512, 512)
    prep["b1"] = jnp.concatenate([bi_off1, bi_act1], axis=1)                     # (1, 512)

    w2 = jnp.zeros((2 * HEAD_HID, OUT_PAD), jnp.float32)
    w2 = w2.at[:HEAD_HID, :N_OFF].set(p["w_off2"])
    w2 = w2.at[HEAD_HID:, N_OFF:N_OFF + N_ACT].set(p["w_act2"])
    prep["w2"] = w2.astype(jnp.bfloat16)                                          # (512, 128)
    b2 = jnp.zeros((1, OUT_PAD), jnp.float32)
    b2 = b2.at[:, :N_OFF].set(p["bi_off2"])
    b2 = b2.at[:, N_OFF:N_OFF + N_ACT].set(p["bi_act2"])
    prep["b2"] = b2
    return prep


# ----------------------------- pure-JAX reference ----------------------------
def reference_forward(mvimages, p):
    hp = jax.lax.Precision.HIGHEST
    B, V = mvimages.shape[0], mvimages.shape[1]
    x = mvimages.reshape(B, V, -1).astype(jnp.float32)
    feats = jnp.einsum("bvf,fo->bvo", x, p["w_backbone"], precision=hp) + p["b_backbone"][0]
    pooled = jnp.max(feats, axis=1)

    def ln(z, g, b):
        mu = z.mean(-1, keepdims=True)
        var = ((z - mu) ** 2).mean(-1, keepdims=True)
        return (z - mu) / jnp.sqrt(var + EPS) * g + b

    silu = lambda z: z * jax.nn.sigmoid(z)
    h = silu(jnp.matmul(ln(pooled, p["g_in"][0], p["b_in"][0]), p["w_in"],
                        precision=hp) + p["bi_in"][0])
    ho = silu(jnp.matmul(ln(h, p["g_off"][0], p["b_off"][0]), p["w_off1"],
                         precision=hp) + p["bi_off1"][0])
    off = jnp.matmul(ho, p["w_off2"], precision=hp) + p["bi_off2"][0]
    ha = silu(jnp.matmul(ln(h, p["g_act"][0], p["b_act"][0]), p["w_act1"],
                         precision=hp) + p["bi_act1"][0])
    act = jnp.matmul(ha, p["w_act2"], precision=hp) + p["bi_act2"][0]
    return off, act, feats


if __name__ == "__main__":
    B, V, C, D, H, W = 2, 2, 3, 4, 8, 8          # small shapes; F_in = 768
    key = jax.random.PRNGKey(0)
    k_x, k_p = jax.random.split(key)
    mvimages = jax.random.normal(k_x, (B, V, C, D, H, W), jnp.float32)
    params = init_params(k_p, C * D * H * W)
    prep = prepare_params(params)

    off, act, attention = jax.block_until_ready(
        jax.jit(mv_aggregate_forward)(mvimages, prep))

    off_ref, act_ref, attn_ref = reference_forward(mvimages, params)
    assert off.shape == (B, N_OFF) and act.shape == (B, N_ACT)
    assert attention.shape == (B, V, FEAT_DIM)
    assert jnp.allclose(off, off_ref, rtol=1e-2, atol=1e-2)
    assert jnp.allclose(act, act_ref, rtol=1e-2, atol=1e-2)
    assert jnp.allclose(attention, attn_ref, rtol=1e-2, atol=1e-2)

    print("KERNEL_OK")
</pallas_src>

<mosaic_0001>
module attributes {stable_mosaic.version = 11 : i64} {
  func.func @kernel(%arg0: i32, %arg1: i32, %arg2: memref<4x768xf32, #tpu.memory_space<vmem>>, %arg3: memref<768x128xbf16, #tpu.memory_space<vmem>>, %arg4: memref<1x128xf32, #tpu.memory_space<vmem>>, %arg5: memref<128x512xbf16, #tpu.memory_space<vmem>>, %arg6: memref<1x512xf32, #tpu.memory_space<vmem>>, %arg7: memref<512x512xbf16, #tpu.memory_space<vmem>>, %arg8: memref<1x512xf32, #tpu.memory_space<vmem>>, %arg9: memref<512x128xbf16, #tpu.memory_space<vmem>>, %arg10: memref<1x128xf32, #tpu.memory_space<vmem>>, %arg11: memref<4x128xf32, #tpu.memory_space<vmem>>, %arg12: memref<2x128xf32, #tpu.memory_space<vmem>>) attributes {dimension_semantics = [#tpu.dimension_semantics<parallel>, #tpu.dimension_semantics<arbitrary>], iteration_bounds = array<i64: 1, 1>, scalar_prefetch = 0 : i64, scratch_operands = 0 : i64, tpu.core_type = #tpu.core_type<tc>, window_params = [{transform_indices = @transform_0, window_bounds = array<i64: 4, 768>}, {transform_indices = @transform_1, window_bounds = array<i64: 768, 128>}, {pipeline_mode = #tpu.pipeline_mode<synchronous>, transform_indices = @transform_2, window_bounds = array<i64: 1, 128>}, {pipeline_mode = #tpu.pipeline_mode<synchronous>, transform_indices = @transform_3, window_bounds = array<i64: 128, 512>}, {pipeline_mode = #tpu.pipeline_mode<synchronous>, transform_indices = @transform_4, window_bounds = array<i64: 1, 512>}, {pipeline_mode = #tpu.pipeline_mode<synchronous>, transform_indices = @transform_5, window_bounds = array<i64: 512, 512>}, {pipeline_mode = #tpu.pipeline_mode<synchronous>, transform_indices = @transform_6, window_bounds = array<i64: 1, 512>}, {pipeline_mode = #tpu.pipeline_mode<synchronous>, transform_indices = @transform_7, window_bounds = array<i64: 512, 128>}, {pipeline_mode = #tpu.pipeline_mode<synchronous>, transform_indices = @transform_8, window_bounds = array<i64: 1, 128>}, {transform_indices = @transform_9, window_bounds = array<i64: 4, 128>}, {transform_indices = @transform_10, window_bounds = array<i64: 2, 128>}]} {
    %c0 = arith.constant 0 : index
    %c0_0 = arith.constant 0 : index
    %0 = vector.load %arg2[%c0, %c0_0] : memref<4x768xf32, #tpu.memory_space<vmem>>, vector<4x768xf32>
    %1 = arith.truncf %0 : vector<4x768xf32> to vector<4x768xbf16>
    %c0_1 = arith.constant 0 : index
    %c0_2 = arith.constant 0 : index
    %2 = vector.load %arg3[%c0_1, %c0_2] : memref<768x128xbf16, #tpu.memory_space<vmem>>, vector<768x128xbf16>
    %cst = arith.constant dense<0.000000e+00> : vector<4x128xf32>
    %3 = tpu.matmul %1, %2, %cst {dimension_numbers = #tpu.dot_dimension_numbers<[1], [0], [0], [1], [0, 0, 1, 1], [], []>} : vector<4x768xbf16>, vector<768x128xbf16>, vector<4x128xf32> -> vector<4x128xf32>
    %c0_i32 = arith.constant 0 : i32
    %4 = arith.cmpi eq, %arg1, %c0_i32 : i32
    %5 = arith.extui %4 : i1 to i32
    %c0_i32_3 = arith.constant 0 : i32
    %6 = arith.cmpi ne, %5, %c0_i32_3 : i32
    scf.if %6 {
      %c0_8 = arith.constant 0 : index
      %c0_9 = arith.constant 0 : index
      %13 = vector.load %arg11[%c0_8, %c0_9] : memref<4x128xf32, #tpu.memory_space<vmem>>, vector<4x128xf32>
      tpu.vector_store %arg11[%c0_8, %c0_9], %3 {strides = array<i32>} : memref<4x128xf32, #tpu.memory_space<vmem>>, vector<4x128xf32>,
    } else {
    }
    %c0_i32_4 = arith.constant 0 : i32
    %7 = arith.cmpi sgt, %arg1, %c0_i32_4 : i32
    %8 = arith.extui %7 : i1 to i32
    %c0_i32_5 = arith.constant 0 : i32
    %9 = arith.cmpi ne, %8, %c0_i32_5 : i32
    scf.if %9 {
      %c0_8 = arith.constant 0 : index
      %c0_9 = arith.constant 0 : index
      %13 = vector.load %arg11[%c0_8, %c0_9] : memref<4x128xf32, #tpu.memory_space<vmem>>, vector<4x128xf32>
      %14 = arith.addf %13, %3 : vector<4x128xf32>
      %c0_10 = arith.constant 0 : index
      %c0_11 = arith.constant 0 : index
      %15 = vector.load %arg11[%c0_10, %c0_11] : memref<4x128xf32, #tpu.memory_space<vmem>>, vector<4x128xf32>
      tpu.vector_store %arg11[%c0_10, %c0_11], %14 {strides = array<i32>} : memref<4x128xf32, #tpu.memory_space<vmem>>, vector<4x128xf32>,
    } else {
    }
    %c0_i32_6 = arith.constant 0 : i32
    %10 = arith.cmpi eq, %arg1, %c0_i32_6 : i32
    %11 = arith.extui %10 : i1 to i32
    %c0_i32_7 = arith.constant 0 : i32
    %12 = arith.cmpi ne, %11, %c0_i32_7 : i32
    scf.if %12 {
      %c0_8 = arith.constant 0 : index
      %c0_9 = arith.constant 0 : index
      %13 = vector.load %arg11[%c0_8, %c0_9] : memref<4x128xf32, #tpu.memory_space<vmem>>, vector<4x128xf32>
      %c0_10 = arith.constant 0 : index
      %c0_11 = arith.constant 0 : index
      %14 = vector.load %arg4[%c0_10, %c0_11] : memref<1x128xf32, #tpu.memory_space<vmem>>, vector<1x128xf32>
      %15 = vector.broadcast %14 : vector<1x128xf32> to vector<4x128xf32>
      %16 = arith.addf %13, %15 : vector<4x128xf32>
      %c0_12 = arith.constant 0 : index
      %c0_13 = arith.constant 0 : index
      %17 = vector.load %arg11[%c0_12, %c0_13] : memref<4x128xf32, #tpu.memory_space<vmem>>, vector<4x128xf32>
      tpu.vector_store %arg11[%c0_12, %c0_13], %16 {strides = array<i32>} : memref<4x128xf32, #tpu.memory_space<vmem>>, vector<4x128xf32>,
      %c0_14 = arith.constant 0 : index
      %c0_15 = arith.constant 0 : index
      %18 = tpu.strided_load %arg11[%c0_14, %c0_15] {strides = array<i32: 2, 1>} : memref<4x128xf32, #tpu.memory_space<vmem>>, vector<2x128xf32>
      %c1 = arith.constant 1 : index
      %c0_16 = arith.constant 0 : index
      %19 = tpu.strided_load %arg11[%c1, %c0_16] {strides = array<i32: 2, 1>} : memref<4x128xf32, #tpu.memory_space<vmem>>, vector<2x128xf32>
      %20 = arith.maximumf %18, %19 : vector<2x128xf32>
      %cst_17 = arith.constant dense<0.000000e+00> : vector<2xf32>
      %21 = vector.multi_reduction <add>, %20, %cst_17 [1] : vector<2x128xf32> to vector<2xf32>
      %22 = vector.shape_cast %21 : vector<2xf32> to vector<2x1xf32>
      %cst_18 = arith.constant 1.280000e+02 : f32
      %23 = vector.broadcast %cst_18 : f32 to vector<2x1xf32>
      %24 = arith.divf %22, %23 : vector<2x1xf32>
      %25 = vector.broadcast %24 : vector<2x1xf32> to vector<2x128xf32>
      %26 = arith.subf %20, %25 : vector<2x128xf32>
      %27 = arith.mulf %26, %26 : vector<2x128xf32>
      %cst_19 = arith.constant dense<0.000000e+00> : vector<2xf32>
      %28 = vector.multi_reduction <add>, %27, %cst_19 [1] : vector<2x128xf32> to vector<2xf32>
      %29 = vector.shape_cast %28 : vector<2xf32> to vector<2x1xf32>
      %cst_20 = arith.constant 1.280000e+02 : f32
      %30 = vector.broadcast %cst_20 : f32 to vector<2x1xf32>
      %31 = arith.divf %29, %30 : vector<2x1xf32>
      %32 = vector.broadcast %24 : vector<2x1xf32> to vector<2x128xf32>
      %33 = arith.subf %20, %32 : vector<2x128xf32>
      %cst_21 = arith.constant 9.99999974E-6 : f32
      %34 = vector.broadcast %cst_21 : f32 to vector<2x1xf32>
      %35 = arith.addf %31, %34 : vector<2x1xf32>
      %36 = math.rsqrt %35 : vector<2x1xf32>
      %37 = vector.broadcast %36 : vector<2x1xf32> to vector<2x128xf32>
      %38 = arith.mulf %33, %37 : vector<2x128xf32>
      %c0_22 = arith.constant 0 : index
      %c0_23 = arith.constant 0 : index
      %39 = vector.load %arg5[%c0_22, %c0_23] : memref<128x512xbf16, #tpu.memory_space<vmem>>, vector<128x512xbf16>
      %40 = arith.extf %39 : vector<128x512xbf16> to vector<128x512xf32>
      %cst_24 = arith.constant dense<0.000000e+00> : vector<2x512xf32>
      %41 = tpu.matmul %38, %40, %cst_24 {dimension_numbers = #tpu.dot_dimension_numbers<[1], [0], [0], [1], [0, 0, 1, 1], [], []>} : vector<2x128xf32>, vector<128x512xf32>, vector<2x512xf32> -> vector<2x512xf32>
      %c0_25 = arith.constant 0 : index
      %c0_26 = arith.constant 0 : index
      %42 = vector.load %arg6[%c0_25, %c0_26] : memref<1x512xf32, #tpu.memory_space<vmem>>, vector<1x512xf32>
      %43 = vector.broadcast %42 : vector<1x512xf32> to vector<2x512xf32>
      %44 = arith.addf %41, %43 : vector<2x512xf32>
      %cst_27 = arith.constant 0.000000e+00 : f32
      %45 = vector.broadcast %cst_27 : f32 to vector<2x512xf32>
      %46 = arith.subf %45, %44 : vector<2x512xf32>
      %47 = math.exp %46 : vector<2x512xf32>
      %cst_28 = arith.constant 1.000000e+00 : f32
      %48 = vector.broadcast %cst_28 : f32 to vector<2x512xf32>
      %49 = arith.addf %48, %47 : vector<2x512xf32>
      %50 = tpu.reciprocal %49 {approx = true} : vector<2x512xf32> -> vector<2x512xf32>
      %51 = arith.mulf %44, %50 : vector<2x512xf32>
      %cst_29 = arith.constant dense<0.000000e+00> : vector<2xf32>
      %52 = vector.multi_reduction <add>, %51, %cst_29 [1] : vector<2x512xf32> to vector<2xf32>
      %53 = vector.shape_cast %52 : vector<2xf32> to vector<2x1xf32>
      %cst_30 = arith.constant 5.120000e+02 : f32
      %54 = vector.broadcast %cst_30 : f32 to vector<2x1xf32>
      %55 = arith.divf %53, %54 : vector<2x1xf32>
      %56 = vector.broadcast %55 : vector<2x1xf32> to vector<2x512xf32>
      %57 = arith.subf %51, %56 : vector<2x512xf32>
      %58 = arith.mulf %57, %57 : vector<2x512xf32>
      %cst_31 = arith.constant dense<0.000000e+00> : vector<2xf32>
      %59 = vector.multi_reduction <add>, %58, %cst_31 [1] : vector<2x512xf32> to vector<2xf32>
      %60 = vector.shape_cast %59 : vector<2xf32> to vector<2x1xf32>
      %cst_32 = arith.constant 5.120000e+02 : f32
      %61 = vector.broadcast %cst_32 : f32 to vector<2x1xf32>
      %62 = arith.divf %60, %61 : vector<2x1xf32>
      %63 = vector.broadcast %55 : vector<2x1xf32> to vector<2x512xf32>
      %64 = arith.subf %51, %63 : vector<2x512xf32>
      %cst_33 = arith.constant 9.99999974E-6 : f32
      %65 = vector.broadcast %cst_33 : f32 to vector<2x1xf32>
      %66 = arith.addf %62, %65 : vector<2x1xf32>
      %67 = math.rsqrt %66 : vector<2x1xf32>
      %68 = vector.broadcast %67 : vector<2x1xf32> to vector<2x512xf32>
      %69 = arith.mulf %64, %68 : vector<2x512xf32>
      %c0_34 = arith.constant 0 : index
      %c0_35 = arith.constant 0 : index
      %70 = vector.load %arg7[%c0_34, %c0_35] : memref<512x512xbf16, #tpu.memory_space<vmem>>, vector<512x512xbf16>
      %71 = arith.extf %70 : vector<512x512xbf16> to vector<512x512xf32>
      %cst_36 = arith.constant dense<0.000000e+00> : vector<2x512xf32>
      %72 = tpu.matmul %69, %71, %cst_36 {dimension_numbers = #tpu.dot_dimension_numbers<[1], [0], [0], [1], [0, 0, 1, 1], [], []>} : vector<2x512xf32>, vector<512x512xf32>, vector<2x512xf32> -> vector<2x512xf32>
      %c0_37 = arith.constant 0 : index
      %c0_38 = arith.constant 0 : index
      %73 = vector.load %arg8[%c0_37, %c0_38] : memref<1x512xf32, #tpu.memory_space<vmem>>, vector<1x512xf32>
      %74 = vector.broadcast %73 : vector<1x512xf32> to vector<2x512xf32>
      %75 = arith.addf %72, %74 : vector<2x512xf32>
      %cst_39 = arith.constant 0.000000e+00 : f32
      %76 = vector.broadcast %cst_39 : f32 to vector<2x512xf32>
      %77 = arith.subf %76, %75 : vector<2x512xf32>
      %78 = math.exp %77 : vector<2x512xf32>
      %cst_40 = arith.constant 1.000000e+00 : f32
      %79 = vector.broadcast %cst_40 : f32 to vector<2x512xf32>
      %80 = arith.addf %79, %78 : vector<2x512xf32>
      %81 = tpu.reciprocal %80 {approx = true} : vector<2x512xf32> -> vector<2x512xf32>
      %82 = arith.mulf %75, %81 : vector<2x512xf32>
      %c0_41 = arith.constant 0 : index
      %c0_42 = arith.constant 0 : index
      %83 = vector.load %arg9[%c0_41, %c0_42] : memref<512x128xbf16, #tpu.memory_space<vmem>>, vector<512x128xbf16>
      %84 = arith.extf %83 : vector<512x128xbf16> to vector<512x128xf32>
      %cst_43 = arith.constant dense<0.000000e+00> : vector<2x128xf32>
      %85 = tpu.matmul %82, %84, %cst_43 {dimension_numbers = #tpu.dot_dimension_numbers<[1], [0], [0], [1], [0, 0, 1, 1], [], []>} : vector<2x512xf32>, vector<512x128xf32>, vector<2x128xf32> -> vector<2x128xf32>
      %c0_44 = arith.constant 0 : index
      %c0_45 = arith.constant 0 : index
      %86 = vector.load %arg10[%c0_44, %c0_45] : memref<1x128xf32, #tpu.memory_space<vmem>>, vector<1x128xf32>
      %87 = vector.broadcast %86 : vector<1x128xf32> to vector<2x128xf32>
      %88 = arith.addf %85, %87 : vector<2x128xf32>
      %c0_46 = arith.constant 0 : index
      %c0_47 = arith.constant 0 : index
      %89 = vector.load %arg12[%c0_46, %c0_47] : memref<2x128xf32, #tpu.memory_space<vmem>>, vector<2x128xf32>
      tpu.vector_store %arg12[%c0_46, %c0_47], %88 {strides = array<i32>} : memref<2x128xf32, #tpu.memory_space<vmem>>, vector<2x128xf32>,
    } else {
    }
    return
  }
  func.func @transform_0(%arg0: i32, %arg1: i32) -> (i32, i32) {
    %c0_i32 = arith.constant 0 : i32
    return %arg0, %arg1 : i32, i32
  }
  func.func @transform_1(%arg0: i32, %arg1: i32) -> (i32, i32) {
    %c0_i32 = arith.constant 0 : i32
    %c0_i32_0 = arith.constant 0 : i32
    return %arg1, %c0_i32 : i32, i32
  }
  func.func @transform_2(%arg0: i32, %arg1: i32) -> (i32, i32) {
    %c0_i32 = arith.constant 0 : i32
    %c0_i32_0 = arith.constant 0 : i32
    %c0_i32_1 = arith.constant 0 : i32
    return %c0_i32, %c0_i32_0 : i32, i32
  }
  func.func @transform_3(%arg0: i32, %arg1: i32) -> (i32, i32) {
    %c0_i32 = arith.constant 0 : i32
    %c0_i32_0 = arith.constant 0 : i32
    %c0_i32_1 = arith.constant 0 : i32
    return %c0_i32, %c0_i32_0 : i32, i32
  }
  func.func @transform_4(%arg0: i32, %arg1: i32) -> (i32, i32) {
    %c0_i32 = arith.constant 0 : i32
    %c0_i32_0 = arith.constant 0 : i32
    %c0_i32_1 = arith.constant 0 : i32
    return %c0_i32, %c0_i32_0 : i32, i32
  }
  func.func @transform_5(%arg0: i32, %arg1: i32) -> (i32, i32) {
    %c0_i32 = arith.constant 0 : i32
    %c0_i32_0 = arith.constant 0 : i32
    %c0_i32_1 = arith.constant 0 : i32
    return %c0_i32, %c0_i32_0 : i32, i32
  }
  func.func @transform_6(%arg0: i32, %arg1: i32) -> (i32, i32) {
    %c0_i32 = arith.constant 0 : i32
    %c0_i32_0 = arith.constant 0 : i32
    %c0_i32_1 = arith.constant 0 : i32
    return %c0_i32, %c0_i32_0 : i32, i32
  }
  func.func @transform_7(%arg0: i32, %arg1: i32) -> (i32, i32) {
    %c0_i32 = arith.constant 0 : i32
    %c0_i32_0 = arith.constant 0 : i32
    %c0_i32_1 = arith.constant 0 : i32
    return %c0_i32, %c0_i32_0 : i32, i32
  }
  func.func @transform_8(%arg0: i32, %arg1: i32) -> (i32, i32) {
    %c0_i32 = arith.constant 0 : i32
    %c0_i32_0 = arith.constant 0 : i32
    %c0_i32_1 = arith.constant 0 : i32
    return %c0_i32, %c0_i32_0 : i32, i32
  }
  func.func @transform_9(%arg0: i32, %arg1: i32) -> (i32, i32) {
    %c0_i32 = arith.constant 0 : i32
    %c0_i32_0 = arith.constant 0 : i32
    return %arg0, %c0_i32 : i32, i32
  }
  func.func @transform_10(%arg0: i32, %arg1: i32) -> (i32, i32) {
    %c0_i32 = arith.constant 0 : i32
    %c0_i32_0 = arith.constant 0 : i32
    return %arg0, %c0_i32 : i32, i32
  }
}

</mosaic_0001>

<llo_original>
// kernel: mv_aggregate_forward.1
$region0: #{mv_aggregate_forward.1}
  #allocation0 [shape = 'u32[]', space=smem, size = 0x4, offset = 0x4, fixed_abs, tag = 'smem constant byte address 0x4 - core index']
  #allocation1 [shape = 'u32[144,128]{1,0:T(1,128)}', space=vmem, size = 0x12000, scoped, tag = 'internal scratch']
  %s0 = inlined_call_operand.vmem [shape: f32[4,768], index: 0, kind: input, shape index: {}]
  %s1 = inlined_call_operand.vmem [shape: bf16[768,128], index: 1, kind: input, shape index: {}]
  %s2 = inlined_call_operand.vmem [shape: f32[1,128], index: 2, kind: input, shape index: {}]
  %s3 = inlined_call_operand.hbm [shape: bf16[128,512], index: 3, kind: input, shape index: {}]
  %s4 = inlined_call_operand.vmem [shape: f32[1,512], index: 4, kind: input, shape index: {}]
  %s5 = inlined_call_operand.hbm [shape: bf16[512,512], index: 5, kind: input, shape index: {}]
  %s6 = inlined_call_operand.vmem [shape: f32[1,512], index: 6, kind: input, shape index: {}]
  %s7 = inlined_call_operand.hbm [shape: bf16[512,128], index: 7, kind: input, shape index: {}]
  %s8 = inlined_call_operand.vmem [shape: f32[1,128], index: 8, kind: input, shape index: {}]
  %s9 = inlined_call_operand.hbm [shape: f32[4,128], index: 9, kind: output, shape index: {0}]
  %s10 = inlined_call_operand.vmem [shape: f32[2,128], index: 10, kind: output, shape index: {1}]
  %11 = xla_tuple %s9, %s10
  %s12 = sld [smem:[#allocation0]]
  $region78: #{mv_aggregate_forward.1} parent=0
    _
  %s14 = ssub.s32 1, %s12
  %s15 = scalar_select 0, %s14, %s12
  $region1: #{mv_aggregate_forward.1} parent=0
    #allocation2 [shape = 'u8[131072]{0}', space=vmem, size = 0x20000, scoped, tag = 'input window, operand 3, single buffered']
    #allocation3 [shape = 's32[1]{0}', space=sflag, size = 0x4, scoped, tag = 'scoped memory for mv_aggregate_forward.1']
    #allocation4 [shape = 's32[1]{0}', space=sflag, size = 0x4, scoped, tag = 'scoped memory for mv_aggregate_forward.1']
    #allocation5 [shape = 'u8[524288]{0}', space=vmem, size = 0x80000, scoped, tag = 'input window, operand 5, single buffered']
    #allocation6 [shape = 's32[1]{0}', space=sflag, size = 0x4, scoped, tag = 'scoped memory for mv_aggregate_forward.1']
    #allocation7 [shape = 'u8[131072]{0}', space=vmem, size = 0x20000, scoped, tag = 'input window, operand 7, single buffered']
    #allocation8 [shape = 'u8[2048]{0}', space=vmem, size = 0x800, scoped, tag = 'output window, operand 0, single buffered']
    %16 = vsyncpa [#allocation3], 0
    %17 = vsyncpa [#allocation6], 0
    %18 = vsyncpa [#allocation4], 0
    // Predicated region
    $region2: #{mv_aggregate_forward.1} parent=1 // pred_check
      _
    $region3: #{mv_aggregate_forward.1} parent=1 // pred_check_branch
      %20 = sbr.rel (0) target = $region5
    $region4: #{mv_aggregate_forward.1} parent=1 // pred_region
      _
    $region5: #{mv_aggregate_forward.1} parent=1 // pred_fallthru
      _
    // Predicated region
    $region6: #{mv_aggregate_forward.1} parent=1 // pred_check
      _
    $region7: #{mv_aggregate_forward.1} parent=1 // pred_check_branch
      %22 = sbr.rel (0) target = $region9
    $region8: #{mv_aggregate_forward.1} parent=1 // pred_region
      _
    $region9: #{mv_aggregate_forward.1} parent=1 // pred_fallthru
      _
    // Predicated region
    $region10: #{mv_aggregate_forward.1} parent=1 // pred_check
      _
    $region11: #{mv_aggregate_forward.1} parent=1 // pred_check_branch
      %24 = sbr.rel (0) target = $region13
    $region12: #{mv_aggregate_forward.1} parent=1 // pred_region
      _
    $region13: #{mv_aggregate_forward.1} parent=1 // pred_fallthru
      _
    // Predicated region
    $region14: #{mv_aggregate_forward.1} parent=1 // pred_check
      _
    $region15: #{mv_aggregate_forward.1} parent=1 // pred_check_branch
      %26 = sbr.rel (0) target = $region17
    $region16: #{mv_aggregate_forward.1} parent=1 // pred_region
      %s28 = ssub.s32 4096, 4096
      %29 = vsyncadd [#allocation3], %s28
      %s30 = sshll.u32 [#allocation2], 4
      %s31 = int_to_ptr.vmem [resolvable:$true] %s30
      %36 = dma.hbm_to_vmem [thread:$0]  %s3, 4096, %s31, [#allocation3], 256, 256, 16
    $region17: #{mv_aggregate_forward.1} parent=1 // pred_fallthru
      _
    // Predicated region
    $region18: #{mv_aggregate_forward.1} parent=1 // pred_check
      _
    $region19: #{mv_aggregate_forward.1} parent=1 // pred_check_branch
      %38 = sbr.rel (0) target = $region21
    $region20: #{mv_aggregate_forward.1} parent=1 // pred_region
      _
    $region21: #{mv_aggregate_forward.1} parent=1 // pred_fallthru
      _
    // Predicated region
    $region22: #{mv_aggregate_forward.1} parent=1 // pred_check
      _
    $region23: #{mv_aggregate_forward.1} parent=1 // pred_check_branch
      %40 = sbr.rel (0) target = $region25
    $region24: #{mv_aggregate_forward.1} parent=1 // pred_region
      %s42 = ssub.s32 16384, 16384
      %43 = vsyncadd [#allocation6], %s42
      %s44 = sshll.u32 [#allocation5], 4
      %s45 = int_to_ptr.vmem [resolvable:$true] %s44
      %50 = dma.hbm_to_vmem [thread:$0]  %s5, 16384, %s45, [#allocation6], 256, 256, 16
    $region25: #{mv_aggregate_forward.1} parent=1 // pred_fallthru
      _
    // Predicated region
    $region26: #{mv_aggregate_forward.1} parent=1 // pred_check
      _
    $region27: #{mv_aggregate_forward.1} parent=1 // pred_check_branch
      %52 = sbr.rel (0) target = $region29
    $region28: #{mv_aggregate_forward.1} parent=1 // pred_region
      _
    $region29: #{mv_aggregate_forward.1} parent=1 // pred_fallthru
      _
    // Predicated region
    $region30: #{mv_aggregate_forward.1} parent=1 // pred_check
      _
    $region31: #{mv_aggregate_forward.1} parent=1 // pred_check_branch
      %54 = sbr.rel (0) target = $region33
    $region32: #{mv_aggregate_forward.1} parent=1 // pred_region
      %s56 = ssub.s32 4096, 4096
      %57 = vsyncadd [#allocation6], %s56
      %s58 = sshll.u32 [#allocation7], 4
      %s59 = int_to_ptr.vmem [resolvable:$true] %s58
      %64 = dma.hbm_to_vmem [thread:$0]  %s7, 4096, %s59, [#allocation6], 64, 64, 4
    $region33: #{mv_aggregate_forward.1} parent=1 // pred_fallthru
      _
    // Predicated region
    $region34: #{mv_aggregate_forward.1} parent=1 // pred_check
      _
    $region35: #{mv_aggregate_forward.1} parent=1 // pred_check_branch
      %66 = sbr.rel (0) target = $region37
    $region36: #{mv_aggregate_forward.1} parent=1 // pred_region
      _
    $region37: #{mv_aggregate_forward.1} parent=1 // pred_fallthru
      _
    // Predicated region
    $region38: #{mv_aggregate_forward.1} parent=1 // pred_check
      _
    $region39: #{mv_aggregate_forward.1} parent=1 // pred_check_branch
      %68 = sbr.rel (0) target = $region41
    $region40: #{mv_aggregate_forward.1} parent=1 // pred_region
      %69 = dma.done [#allocation3], 4096
    $region41: #{mv_aggregate_forward.1} parent=1 // pred_fallthru
      _
    // Predicated region
    $region42: #{mv_aggregate_forward.1} parent=1 // pred_check
      _
    $region43: #{mv_aggregate_forward.1} parent=1 // pred_check_branch
      %71 = sbr.rel (0) target = $region45
    $region44: #{mv_aggregate_forward.1} parent=1 // pred_region
      %72 = dma.done [#allocation6], 16384
    $region45: #{mv_aggregate_forward.1} parent=1 // pred_fallthru
      _
    // Predicated region
    $region46: #{mv_aggregate_forward.1} parent=1 // pred_check
      _
    $region47: #{mv_aggregate_forward.1} parent=1 // pred_check_branch
      %74 = sbr.rel (0) target = $region49
    $region48: #{mv_aggregate_forward.1} parent=1 // pred_region
      %75 = dma.done [#allocation6], 4096
    $region49: #{mv_aggregate_forward.1} parent=1 // pred_fallthru
      _
    %v77 = vld [vmem:[%s0] sm:$0xff]
    %v78 = vld [vmem:[%s0 + $0x8] sm:$0xff]
    %v79 = vld [vmem:[%s0 + $0x10] sm:$0xff]
    %v83 = vcombine.high %v77, %v77
    %v84 = vcombine.high %v78, %v78
    %v85 = vcombine.high %v79, %v79
    %v89 = vpack.c.bf16 %v77, %v77
    %v90 = vpack.c.bf16 %v83, %v83
    %v91 = vpack.c.bf16 %v78, %v78
    %v92 = vpack.c.bf16 %v84, %v84
    %v93 = vpack.c.bf16 %v79, %v79
    %v94 = vpack.c.bf16 %v85, %v85
    %v95 = vld [vmem:[%s1] sm:$0xf]
    %v96 = vld [vmem:[%s1 + $0x4] sm:$0xf]
    %v97 = vld [vmem:[%s1 + $0x8] sm:$0xf]
    %v98 = vld [vmem:[%s1 + $0xc] sm:$0xf]
    %v99 = vld [vmem:[%s1 + $0x10] sm:$0xf]
    %v100 = vld [vmem:[%s1 + $0x14] sm:$0xf]
    %v101 = vld [vmem:[%s1 + $0x18] sm:$0xf]
    %v102 = vld [vmem:[%s1 + $0x1c] sm:$0xf]
    %v103 = vld [vmem:[%s1 + $0x20] sm:$0xf]
    %v104 = vld [vmem:[%s1 + $0x24] sm:$0xf]
    %v105 = vld [vmem:[%s1 + $0x28] sm:$0xf]
    %v106 = vld [vmem:[%s1 + $0x2c] sm:$0xf]
    %v107 = vld [vmem:[%s1 + $0x30] sm:$0xf]
    %v108 = vld [vmem:[%s1 + $0x34] sm:$0xf]
    %v109 = vld [vmem:[%s1 + $0x38] sm:$0xf]
    %v110 = vld [vmem:[%s1 + $0x3c] sm:$0xf]
    %v111 = vld [vmem:[%s1 + $0x40] sm:$0xf]
    %v112 = vld [vmem:[%s1 + $0x44] sm:$0xf]
    %v113 = vld [vmem:[%s1 + $0x48] sm:$0xf]
    %v114 = vld [vmem:[%s1 + $0x4c] sm:$0xf]
    %v115 = vld [vmem:[%s1 + $0x50] sm:$0xf]
    %v116 = vld [vmem:[%s1 + $0x54] sm:$0xf]
    %v117 = vld [vmem:[%s1 + $0x58] sm:$0xf]
    %v118 = vld [vmem:[%s1 + $0x5c] sm:$0xf]
    %v119 = vld [vmem:[%s1 + $0x60] sm:$0xf]
    %v120 = vld [vmem:[%s1 + $0x64] sm:$0xf]
    %v121 = vld [vmem:[%s1 + $0x68] sm:$0xf]
    %v122 = vld [vmem:[%s1 + $0x6c] sm:$0xf]
    %v123 = vld [vmem:[%s1 + $0x70] sm:$0xf]
    %v124 = vld [vmem:[%s1 + $0x74] sm:$0xf]
    %v125 = vld [vmem:[%s1 + $0x78] sm:$0xf]
    %v126 = vld [vmem:[%s1 + $0x7c] sm:$0xf]
    %v127 = vld [vmem:[%s1 + $0x80] sm:$0xf]
    %v128 = vld [vmem:[%s1 + $0x84] sm:$0xf]
    %v129 = vld [vmem:[%s1 + $0x88] sm:$0xf]
    %v130 = vld [vmem:[%s1 + $0x8c] sm:$0xf]
    %v131 = vld [vmem:[%s1 + $0x90] sm:$0xf]
    %v132 = vld [vmem:[%s1 + $0x94] sm:$0xf]
    %v133 = vld [vmem:[%s1 + $0x98] sm:$0xf]
    %v134 = vld [vmem:[%s1 + $0x9c] sm:$0xf]
    %v135 = vld [vmem:[%s1 + $0xa0] sm:$0xf]
    %v136 = vld [vmem:[%s1 + $0xa4] sm:$0xf]
    %v137 = vld [vmem:[%s1 + $0xa8] sm:$0xf]
    %v138 = vld [vmem:[%s1 + $0xac] sm:$0xf]
    %v139 = vld [vmem:[%s1 + $0xb0] sm:$0xf]
    %v140 = vld [vmem:[%s1 + $0xb4] sm:$0xf]
    %v141 = vld [vmem:[%s1 + $0xb8] sm:$0xf]
    %v142 = vld [vmem:[%s1 + $0xbc] sm:$0xf]
    %v143 = vld [vmem:[%s1 + $0xc0] sm:$0xf]
    %v144 = vld [vmem:[%s1 + $0xc4] sm:$0xf]
    %v145 = vld [vmem:[%s1 + $0xc8] sm:$0xf]
    %v146 = vld [vmem:[%s1 + $0xcc] sm:$0xf]
    %v147 = vld [vmem:[%s1 + $0xd0] sm:$0xf]
    %v148 = vld [vmem:[%s1 + $0xd4] sm:$0xf]
    %v149 = vld [vmem:[%s1 + $0xd8] sm:$0xf]
    %v150 = vld [vmem:[%s1 + $0xdc] sm:$0xf]
    %v151 = vld [vmem:[%s1 + $0xe0] sm:$0xf]
    %v152 = vld [vmem:[%s1 + $0xe4] sm:$0xf]
    %v153 = vld [vmem:[%s1 + $0xe8] sm:$0xf]
    %v154 = vld [vmem:[%s1 + $0xec] sm:$0xf]
    %v155 = vld [vmem:[%s1 + $0xf0] sm:$0xf]
    %v156 = vld [vmem:[%s1 + $0xf4] sm:$0xf]
    %v157 = vld [vmem:[%s1 + $0xf8] sm:$0xf]
    %v158 = vld [vmem:[%s1 + $0xfc] sm:$0xf]
    %v159 = vld [vmem:[%s1 + $0x100] sm:$0xf]
    %v160 = vld [vmem:[%s1 + $0x104] sm:$0xf]
    %v161 = vld [vmem:[%s1 + $0x108] sm:$0xf]
    %v162 = vld [vmem:[%s1 + $0x10c] sm:$0xf]
    %v163 = vld [vmem:[%s1 + $0x110] sm:$0xf]
    %v164 = vld [vmem:[%s1 + $0x114] sm:$0xf]
    %v165 = vld [vmem:[%s1 + $0x118] sm:$0xf]
    %v166 = vld [vmem:[%s1 + $0x11c] sm:$0xf]
    %v167 = vld [vmem:[%s1 + $0x120] sm:$0xf]
    %v168 = vld [vmem:[%s1 + $0x124] sm:$0xf]
    %v169 = vld [vmem:[%s1 + $0x128] sm:$0xf]
    %v170 = vld [vmem:[%s1 + $0x12c] sm:$0xf]
    %v171 = vld [vmem:[%s1 + $0x130] sm:$0xf]
    %v172 = vld [vmem:[%s1 + $0x134] sm:$0xf]
    %v173 = vld [vmem:[%s1 + $0x138] sm:$0xf]
    %v174 = vld [vmem:[%s1 + $0x13c] sm:$0xf]
    %v175 = vld [vmem:[%s1 + $0x140] sm:$0xf]
    %v176 = vld [vmem:[%s1 + $0x144] sm:$0xf]
    %v177 = vld [vmem:[%s1 + $0x148] sm:$0xf]
    %v178 = vld [vmem:[%s1 + $0x14c] sm:$0xf]
    %v179 = vld [vmem:[%s1 + $0x150] sm:$0xf]
    %v180 = vld [vmem:[%s1 + $0x154] sm:$0xf]
    %v181 = vld [vmem:[%s1 + $0x158] sm:$0xf]
    %v182 = vld [vmem:[%s1 + $0x15c] sm:$0xf]
    %v183 = vld [vmem:[%s1 + $0x160] sm:$0xf]
    %v184 = vld [vmem:[%s1 + $0x164] sm:$0xf]
    %v185 = vld [vmem:[%s1 + $0x168] sm:$0xf]
    %v186 = vld [vmem:[%s1 + $0x16c] sm:$0xf]
    %v187 = vld [vmem:[%s1 + $0x170] sm:$0xf]
    %v188 = vld [vmem:[%s1 + $0x174] sm:$0xf]
    %v189 = vld [vmem:[%s1 + $0x178] sm:$0xf]
    %v190 = vld [vmem:[%s1 + $0x17c] sm:$0xf]
    %v287 = vunpack.c.l.b16 %v95
    %v288 = vunpack.c.l.b16 %v96
    %v289 = vunpack.c.l.b16 %v97
    %v290 = vunpack.c.l.b16 %v98
    %v291 = vunpack.c.l.b16 %v99
    %v292 = vunpack.c.l.b16 %v100
    %v293 = vunpack.c.l.b16 %v101
    %v294 = vunpack.c.l.b16 %v102
    %v295 = vunpack.c.l.b16 %v103
    %v296 = vunpack.c.l.b16 %v104
    %v297 = vunpack.c.l.b16 %v105
    %v298 = vunpack.c.l.b16 %v106
    %v299 = vunpack.c.l.b16 %v107
    %v300 = vunpack.c.l.b16 %v108
    %v301 = vunpack.c.l.b16 %v109
    %v302 = vunpack.c.l.b16 %v110
    %v303 = vunpack.c.l.b16 %v111
    %v304 = vunpack.c.l.b16 %v112
    %v305 = vunpack.c.l.b16 %v113
    %v306 = vunpack.c.l.b16 %v114
    %v307 = vunpack.c.l.b16 %v115
    %v308 = vunpack.c.l.b16 %v116
    %v309 = vunpack.c.l.b16 %v117
    %v310 = vunpack.c.l.b16 %v118
    %v311 = vunpack.c.l.b16 %v119
    %v312 = vunpack.c.l.b16 %v120
    %v313 = vunpack.c.l.b16 %v121
    %v314 = vunpack.c.l.b16 %v122
    %v315 = vunpack.c.l.b16 %v123
    %v316 = vunpack.c.l.b16 %v124
    %v317 = vunpack.c.l.b16 %v125
    %v318 = vunpack.c.l.b16 %v126
    %v319 = vunpack.c.l.b16 %v127
    %v320 = vunpack.c.l.b16 %v128
    %v321 = vunpack.c.l.b16 %v129
    %v322 = vunpack.c.l.b16 %v130
    %v323 = vunpack.c.l.b16 %v131
    %v324 = vunpack.c.l.b16 %v132
    %v325 = vunpack.c.l.b16 %v133
    %v326 = vunpack.c.l.b16 %v134
    %v327 = vunpack.c.l.b16 %v135
    %v328 = vunpack.c.l.b16 %v136
    %v329 = vunpack.c.l.b16 %v137
    %v330 = vunpack.c.l.b16 %v138
    %v331 = vunpack.c.l.b16 %v139
    %v332 = vunpack.c.l.b16 %v140
    %v333 = vunpack.c.l.b16 %v141
    %v334 = vunpack.c.l.b16 %v142
    %v335 = vunpack.c.l.b16 %v143
    %v336 = vunpack.c.l.b16 %v144
    %v337 = vunpack.c.l.b16 %v145
    %v338 = vunpack.c.l.b16 %v146
    %v339 = vunpack.c.l.b16 %v147
    %v340 = vunpack.c.l.b16 %v148
    %v341 = vunpack.c.l.b16 %v149
    %v342 = vunpack.c.l.b16 %v150
    %v343 = vunpack.c.l.b16 %v151
    %v344 = vunpack.c.l.b16 %v152
    %v345 = vunpack.c.l.b16 %v153
    %v346 = vunpack.c.l.b16 %v154
    %v347 = vunpack.c.l.b16 %v155
    %v348 = vunpack.c.l.b16 %v156
    %v349 = vunpack.c.l.b16 %v157
    %v350 = vunpack.c.l.b16 %v158
    %v351 = vunpack.c.l.b16 %v159
    %v352 = vunpack.c.l.b16 %v160
    %v353 = vunpack.c.l.b16 %v161
    %v354 = vunpack.c.l.b16 %v162
    %v355 = vunpack.c.l.b16 %v163
    %v356 = vunpack.c.l.b16 %v164
    %v357 = vunpack.c.l.b16 %v165
    %v358 = vunpack.c.l.b16 %v166
    %v359 = vunpack.c.l.b16 %v167
    %v360 = vunpack.c.l.b16 %v168
    %v361 = vunpack.c.l.b16 %v169
    %v362 = vunpack.c.l.b16 %v170
    %v363 = vunpack.c.l.b16 %v171
    %v364 = vunpack.c.l.b16 %v172
    %v365 = vunpack.c.l.b16 %v173
    %v366 = vunpack.c.l.b16 %v174
    %v367 = vunpack.c.l.b16 %v175
    %v368 = vunpack.c.l.b16 %v176
    %v369 = vunpack.c.l.b16 %v177
    %v370 = vunpack.c.l.b16 %v178
    %v371 = vunpack.c.l.b16 %v179
    %v372 = vunpack.c.l.b16 %v180
    %v373 = vunpack.c.l.b16 %v181
    %v374 = vunpack.c.l.b16 %v182
    %v375 = vunpack.c.l.b16 %v183
    %v376 = vunpack.c.l.b16 %v184
    %v377 = vunpack.c.l.b16 %v185
    %v378 = vunpack.c.l.b16 %v186
    %v379 = vunpack.c.l.b16 %v187
    %v380 = vunpack.c.l.b16 %v188
    %v381 = vunpack.c.l.b16 %v189
    %v382 = vunpack.c.l.b16 %v190
    %v383 = vpack.c.b16 %v288, %v287
    %v384 = vpack.c.b16 %v290, %v289
    %v385 = vpack.c.b16 %v292, %v291
    %v386 = vpack.c.b16 %v294, %v293
    %v387 = vpack.c.b16 %v296, %v295
    %v388 = vpack.c.b16 %v298, %v297
    %v389 = vpack.c.b16 %v300, %v299
    %v390 = vpack.c.b16 %v302, %v301
    %v391 = vpack.c.b16 %v304, %v303
    %v392 = vpack.c.b16 %v306, %v305
    %v393 = vpack.c.b16 %v308, %v307
    %v394 = vpack.c.b16 %v310, %v309
    %v395 = vpack.c.b16 %v312, %v311
    %v396 = vpack.c.b16 %v314, %v313
    %v397 = vpack.c.b16 %v316, %v315
    %v398 = vpack.c.b16 %v318, %v317
    %v399 = vpack.c.b16 %v320, %v319
    %v400 = vpack.c.b16 %v322, %v321
    %v401 = vpack.c.b16 %v324, %v323
    %v402 = vpack.c.b16 %v326, %v325
    %v403 = vpack.c.b16 %v328, %v327
    %v404 = vpack.c.b16 %v330, %v329
    %v405 = vpack.c.b16 %v332, %v331
    %v406 = vpack.c.b16 %v334, %v333
    %v407 = vpack.c.b16 %v336, %v335
    %v408 = vpack.c.b16 %v338, %v337
    %v409 = vpack.c.b16 %v340, %v339
    %v410 = vpack.c.b16 %v342, %v341
    %v411 = vpack.c.b16 %v344, %v343
    %v412 = vpack.c.b16 %v346, %v345
    %v413 = vpack.c.b16 %v348, %v347
    %v414 = vpack.c.b16 %v350, %v349
    %v415 = vpack.c.b16 %v352, %v351
    %v416 = vpack.c.b16 %v354, %v353
    %v417 = vpack.c.b16 %v356, %v355
    %v418 = vpack.c.b16 %v358, %v357
    %v419 = vpack.c.b16 %v360, %v359
    %v420 = vpack.c.b16 %v362, %v361
    %v421 = vpack.c.b16 %v364, %v363
    %v422 = vpack.c.b16 %v366, %v365
    %v423 = vpack.c.b16 %v368, %v367
    %v424 = vpack.c.b16 %v370, %v369
    %v425 = vpack.c.b16 %v372, %v371
    %v426 = vpack.c.b16 %v374, %v373
    %v427 = vpack.c.b16 %v376, %v375
    %v428 = vpack.c.b16 %v378, %v377
    %v429 = vpack.c.b16 %v380, %v379
    %v430 = vpack.c.b16 %v382, %v381
    %479 = vmatprep.subr.bf16.mxu0 0
    %480 = vmatpush1.bf16.msra.mxu0 %v383
    %481 = vmatprep.subr.bf16.mxu0 0
    %482 = vmatpush1.bf16.msra.mxu0 %v384
    %483 = vmatprep.subr.bf16.mxu0 0
    %484 = vmatpush1.bf16.msra.mxu0 %v385
    %485 = vmatprep.subr.bf16.mxu0 0
    %486 = vmatpush1.bf16.msra.mxu0 %v386
    %487 = vmatprep.subr.bf16.mxu0 0
    %488 = vmatpush1.bf16.msra.mxu0 %v387
    %489 = vmatprep.subr.bf16.mxu0 0
    %490 = vmatpush1.bf16.msra.mxu0 %v388
    %491 = vmatprep.subr.bf16.mxu0 0
    %492 = vmatpush1.bf16.msra.mxu0 %v389
    %493 = vmatprep.subr.bf16.mxu0 0
    %494 = vmatpush1.bf16.msra.mxu0 %v390
    %495 = vmatprep.subr.bf16.mxu0 0
    %496 = vmatpush1.bf16.msra.mxu0 %v391
    %497 = vmatprep.subr.bf16.mxu0 0
    %498 = vmatpush1.bf16.msra.mxu0 %v392
    %499 = vmatprep.subr.bf16.mxu0 0
    %500 = vmatpush1.bf16.msra.mxu0 %v393
    %501 = vmatprep.subr.bf16.mxu0 0
    %502 = vmatpush1.bf16.msra.mxu0 %v394
    %503 = vmatprep.subr.bf16.mxu0 0
    %504 = vmatpush1.bf16.msra.mxu0 %v395
    %505 = vmatprep.subr.bf16.mxu0 0
    %506 = vmatpush1.bf16.msra.mxu0 %v396
    %507 = vmatprep.subr.bf16.mxu0 0
    %508 = vmatpush1.bf16.msra.mxu0 %v397
    %509 = vmatprep.subr.bf16.mxu0 0
    %510 = vmatpush1.bf16.msra.mxu0 %v398
    %511 = vmatprep.mubr.bf16.mxu0 %v90
    %512 = vmatmul.mubr.bf16.gmra.mrb[0].mxu0 %v89
    %v513 = vpop.f32.mrb[0].mxu0
    %v514 = vadd.f32 0.0, %v513
    %v515 = vpop.f32.mrb[0].mxu0
    %v516 = vpop.f32.mrb[0].mxu0
    %v517 = vpop.f32.mrb[0].mxu0
    %518 = vdwg.mxu0
    %519 = vmatprep.subr.bf16.mxu0 0
    %520 = vmatpush1.bf16.msra.mxu0 %v399
    %521 = vmatprep.subr.bf16.mxu0 0
    %522 = vmatpush1.bf16.msra.mxu0 %v400
    %523 = vmatprep.subr.bf16.mxu0 0
    %524 = vmatpush1.bf16.msra.mxu0 %v401
    %525 = vmatprep.subr.bf16.mxu0 0
    %526 = vmatpush1.bf16.msra.mxu0 %v402
    %527 = vmatprep.subr.bf16.mxu0 0
    %528 = vmatpush1.bf16.msra.mxu0 %v403
    %529 = vmatprep.subr.bf16.mxu0 0
    %530 = vmatpush1.bf16.msra.mxu0 %v404
    %531 = vmatprep.subr.bf16.mxu0 0
    %532 = vmatpush1.bf16.msra.mxu0 %v405
    %533 = vmatprep.subr.bf16.mxu0 0
    %534 = vmatpush1.bf16.msra.mxu0 %v406
    %535 = vmatprep.subr.bf16.mxu0 0
    %536 = vmatpush1.bf16.msra.mxu0 %v407
    %537 = vmatprep.subr.bf16.mxu0 0
    %538 = vmatpush1.bf16.msra.mxu0 %v408
    %539 = vmatprep.subr.bf16.mxu0 0
    %540 = vmatpush1.bf16.msra.mxu0 %v409
    %541 = vmatprep.subr.bf16.mxu0 0
    %542 = vmatpush1.bf16.msra.mxu0 %v410
    %543 = vmatprep.subr.bf16.mxu0 0
    %544 = vmatpush1.bf16.msra.mxu0 %v411
    %545 = vmatprep.subr.bf16.mxu0 0
    %546 = vmatpush1.bf16.msra.mxu0 %v412
    %547 = vmatprep.subr.bf16.mxu0 0
    %548 = vmatpush1.bf16.msra.mxu0 %v413
    %549 = vmatprep.subr.bf16.mxu0 0
    %550 = vmatpush1.bf16.msra.mxu0 %v414
    %551 = vmatprep.mubr.bf16.mxu0 %v92
    %552 = vmatmul.mubr.bf16.gmra.mrb[0].mxu0 %v91
    %v553 = vpop.f32.mrb[0].mxu0
    %v554 = vadd.f32 %v514, %v553
    %v555 = vpop.f32.mrb[0].mxu0
    %v556 = vpop.f32.mrb[0].mxu0
    %v557 = vpop.f32.mrb[0].mxu0
    %558 = vdwg.mxu0
    %559 = vmatprep.subr.bf16.mxu0 0
    %560 = vmatpush1.bf16.msra.mxu0 %v415
    %561 = vmatprep.subr.bf16.mxu0 0
    %562 = vmatpush1.bf16.msra.mxu0 %v416
    %563 = vmatprep.subr.bf16.mxu0 0
    %564 = vmatpush1.bf16.msra.mxu0 %v417
    %565 = vmatprep.subr.bf16.mxu0 0
    %566 = vmatpush1.bf16.msra.mxu0 %v418
    %567 = vmatprep.subr.bf16.mxu0 0
    %568 = vmatpush1.bf16.msra.mxu0 %v419
    %569 = vmatprep.subr.bf16.mxu0 0
    %570 = vmatpush1.bf16.msra.mxu0 %v420
    %571 = vmatprep.subr.bf16.mxu0 0
    %572 = vmatpush1.bf16.msra.mxu0 %v421
    %573 = vmatprep.subr.bf16.mxu0 0
    %574 = vmatpush1.bf16.msra.mxu0 %v422
    %575 = vmatprep.subr.bf16.mxu0 0
    %576 = vmatpush1.bf16.msra.mxu0 %v423
    %577 = vmatprep.subr.bf16.mxu0 0
    %578 = vmatpush1.bf16.msra.mxu0 %v424
    %579 = vmatprep.subr.bf16.mxu0 0
    %580 = vmatpush1.bf16.msra.mxu0 %v425
    %581 = vmatprep.subr.bf16.mxu0 0
    %582 = vmatpush1.bf16.msra.mxu0 %v426
    %583 = vmatprep.subr.bf16.mxu0 0
    %584 = vmatpush1.bf16.msra.mxu0 %v427
    %585 = vmatprep.subr.bf16.mxu0 0
    %586 = vmatpush1.bf16.msra.mxu0 %v428
    %587 = vmatprep.subr.bf16.mxu0 0
    %588 = vmatpush1.bf16.msra.mxu0 %v429
    %589 = vmatprep.subr.bf16.mxu0 0
    %590 = vmatpush1.bf16.msra.mxu0 %v430
    %591 = vmatprep.mubr.bf16.mxu0 %v94
    %592 = vmatmul.mubr.bf16.gmra.mrb[0].mxu0 %v93
    %v593 = vpop.f32.mrb[0].mxu0
    %v594 = vadd.f32 %v554, %v593
    %v595 = vpop.f32.mrb[0].mxu0
    %v596 = vpop.f32.mrb[0].mxu0
    %v597 = vpop.f32.mrb[0].mxu0
    %598 = vdwg.mxu0
    %p599 = scmp.eq.s32.totalorder 0, 0
    // Predicated region
    $region50: #{mv_aggregate_forward.1} parent=1 // pred_check
      %p600 = pneg %p599
    $region51: #{mv_aggregate_forward.1} parent=1 // pred_check_branch
      %602 = sbr.rel (%p600) target = $region53
    $region52: #{mv_aggregate_forward.1} parent=1 // pred_region
      %603 = vst [vmem:[#allocation8] sm:$0xf] %v594
    $region53: #{mv_aggregate_forward.1} parent=1 // pred_fallthru
      _
    %p604 = scmp.gt.s32.totalorder 0, 0
    // Predicated region
    $region54: #{mv_aggregate_forward.1} parent=1 // pred_check
      %p605 = pneg %p604
    $region55: #{mv_aggregate_forward.1} parent=1 // pred_check_branch
      %607 = sbr.rel (%p605) target = $region57
    $region56: #{mv_aggregate_forward.1} parent=1 // pred_region
      %v608 = vld [vmem:[#allocation8] sm:$0xf]
      %v609 = vadd.f32 %v608, %v594
      %610 = vst [vmem:[#allocation8] sm:$0xf] %v609
    $region57: #{mv_aggregate_forward.1} parent=1 // pred_fallthru
      _
    // Predicated region
    $region58: #{mv_aggregate_forward.1} parent=1 // pred_check
      %p611 = pneg %p599
    $region59: #{mv_aggregate_forward.1} parent=1 // pred_check_branch
      %613 = sbr.rel (%p611) target = $region61
    $region60: #{mv_aggregate_forward.1} parent=1 // pred_region
      %v614 = vld [vmem:[#allocation8] sm:$0xf]
      %v615 = vld [vmem:[%s2] sm:$0x1]
      %v617 = vlaneseq
      %v618 = vshrl.u32 %v617, 7
      %v619 = vsub.s32 0, %v618
      %v620 = vrot.slane %v615, %v619
      %v622 = vadd.f32 %v614, %v620
      %623 = vst [vmem:[#allocation8] sm:$0xf] %v622
      %v624 = vld [vmem:[#allocation8] ss:$2 sm:$0x3]
      %s625 = scalar_lea.vmem [#allocation8], 1
      %v626 = vld [vmem:[%s625] ss:$2 sm:$0x3]
      %v627 = vmax.f32 %v624, %v626
      %vm628 = vcmask 1041408
      %v629 = vsel %vm628, %v627, 0.0
      %630 = vadd.xlane.f32.xlu0 %v629
      %v631 = vpop.xlane.xlu0 %630
      %v632 = vrcp.pop 128.0
      %v633 = vmul.f32 %v631, %v632
      %v634 = vsub.f32 %v627, %v633
      %v635 = vmul.f32 %v634, %v634
      %v636 = vsel %vm628, %v635, 0.0
      %637 = vadd.xlane.f32.xlu0 %v636
      %v638 = vpop.xlane.xlu0 %637
      %v639 = vmul.f32 %v638, %v632
      %v640 = vadd.f32 %v639, 1e-05
      %v641 = vrsqrt.pop %v640
      %v642 = vmul.f32 %v634, %v641
      %v643 = vld [vmem:[#allocation2] sm:$0xff]
      %v644 = vld [vmem:[#allocation2 + $0x8] sm:$0xff]
      %v645 = vld [vmem:[#allocation2 + $0x10] sm:$0xff]
      %v646 = vld [vmem:[#allocation2 + $0x18] sm:$0xff]
      %v647 = vld [vmem:[#allocation2 + $0x20] sm:$0xff]
      %v648 = vld [vmem:[#allocation2 + $0x28] sm:$0xff]
      %v649 = vld [vmem:[#allocation2 + $0x30] sm:$0xff]
      %v650 = vld [vmem:[#allocation2 + $0x38] sm:$0xff]
      %v651 = vld [vmem:[#allocation2 + $0x40] sm:$0xff]
      %v652 = vld [vmem:[#allocation2 + $0x48] sm:$0xff]
      %v653 = vld [vmem:[#allocation2 + $0x50] sm:$0xff]
      %v654 = vld [vmem:[#allocation2 + $0x58] sm:$0xff]
      %v655 = vld [vmem:[#allocation2 + $0x60] sm:$0xff]
      %v656 = vld [vmem:[#allocation2 + $0x68] sm:$0xff]
      %v657 = vld [vmem:[#allocation2 + $0x70] sm:$0xff]
      %v658 = vld [vmem:[#allocation2 + $0x78] sm:$0xff]
      %v659 = vld [vmem:[#allocation2 + $0x80] sm:$0xff]
      %v660 = vld [vmem:[#allocation2 + $0x88] sm:$0xff]
      %v661 = vld [vmem:[#allocation2 + $0x90] sm:$0xff]
      %v662 = vld [vmem:[#allocation2 + $0x98] sm:$0xff]
      %v663 = vld [vmem:[#allocation2 + $0xa0] sm:$0xff]
      %v664 = vld [vmem:[#allocation2 + $0xa8] sm:$0xff]
      %v665 = vld [vmem:[#allocation2 + $0xb0] sm:$0xff]
      %v666 = vld [vmem:[#allocation2 + $0xb8] sm:$0xff]
      %v667 = vld [vmem:[#allocation2 + $0xc0] sm:$0xff]
      %v668 = vld [vmem:[#allocation2 + $0xc8] sm:$0xff]
      %v669 = vld [vmem:[#allocation2 + $0xd0] sm:$0xff]
      %v670 = vld [vmem:[#allocation2 + $0xd8] sm:$0xff]
      %v671 = vld [vmem:[#allocation2 + $0xe0] sm:$0xff]
      %v672 = vld [vmem:[#allocation2 + $0xe8] sm:$0xff]
      %v673 = vld [vmem:[#allocation2 + $0xf0] sm:$0xff]
      %v674 = vld [vmem:[#allocation2 + $0xf8] sm:$0xff]
      %v675 = vunpack.c.l.bf16 %v643
      %v676 = vunpack.c.h.bf16 %v643
      %v677 = vunpack.c.l.bf16 %v644
      %v678 = vunpack.c.h.bf16 %v644
      %v679 = vunpack.c.l.bf16 %v645
      %v680 = vunpack.c.h.bf16 %v645
      %v681 = vunpack.c.l.bf16 %v646
      %v682 = vunpack.c.h.bf16 %v646
      %v683 = vunpack.c.l.bf16 %v647
      %v684 = vunpack.c.h.bf16 %v647
      %v685 = vunpack.c.l.bf16 %v648
      %v686 = vunpack.c.h.bf16 %v648
      %v687 = vunpack.c.l.bf16 %v649
      %v688 = vunpack.c.h.bf16 %v649
      %v689 = vunpack.c.l.bf16 %v650
      %v690 = vunpack.c.h.bf16 %v650
      %v691 = vunpack.c.l.bf16 %v651
      %v692 = vunpack.c.h.bf16 %v651
      %v693 = vunpack.c.l.bf16 %v652
      %v694 = vunpack.c.h.bf16 %v652
      %v695 = vunpack.c.l.bf16 %v653
      %v696 = vunpack.c.h.bf16 %v653
      %v697 = vunpack.c.l.bf16 %v654
      %v698 = vunpack.c.h.bf16 %v654
      %v699 = vunpack.c.l.bf16 %v655
      %v700 = vunpack.c.h.bf16 %v655
      %v701 = vunpack.c.l.bf16 %v656
      %v702 = vunpack.c.h.bf16 %v656
      %v703 = vunpack.c.l.bf16 %v657
      %v704 = vunpack.c.h.bf16 %v657
      %v705 = vunpack.c.l.bf16 %v658
      %v706 = vunpack.c.h.bf16 %v658
      %v707 = vunpack.c.l.bf16 %v659
      %v708 = vunpack.c.h.bf16 %v659
      %v709 = vunpack.c.l.bf16 %v660
      %v710 = vunpack.c.h.bf16 %v660
      %v711 = vunpack.c.l.bf16 %v661
      %v712 = vunpack.c.h.bf16 %v661
      %v713 = vunpack.c.l.bf16 %v662
      %v714 = vunpack.c.h.bf16 %v662
      %v715 = vunpack.c.l.bf16 %v663
      %v716 = vunpack.c.h.bf16 %v663
      %v717 = vunpack.c.l.bf16 %v664
      %v718 = vunpack.c.h.bf16 %v664
      %v719 = vunpack.c.l.bf16 %v665
      %v720 = vunpack.c.h.bf16 %v665
      %v721 = vunpack.c.l.bf16 %v666
      %v722 = vunpack.c.h.bf16 %v666
      %v723 = vunpack.c.l.bf16 %v667
      %v724 = vunpack.c.h.bf16 %v667
      %v725 = vunpack.c.l.bf16 %v668
      %v726 = vunpack.c.h.bf16 %v668
      %v727 = vunpack.c.l.bf16 %v669
      %v728 = vunpack.c.h.bf16 %v669
      %v729 = vunpack.c.l.bf16 %v670
      %v730 = vunpack.c.h.bf16 %v670
      %v731 = vunpack.c.l.bf16 %v671
      %v732 = vunpack.c.h.bf16 %v671
      %v733 = vunpack.c.l.bf16 %v672
      %v734 = vunpack.c.h.bf16 %v672
      %v735 = vunpack.c.l.bf16 %v673
      %v736 = vunpack.c.h.bf16 %v673
      %v737 = vunpack.c.l.bf16 %v674
      %v738 = vunpack.c.h.bf16 %v674
      %v739 = vld [vmem:[%s4] sm:$0xf]
      %v741 = vlaneseq
      %v742 = vshrl.u32 %v741, 7
      %v743 = vsub.s32 0, %v742
      %v744 = vrot.slane %v739, %v743
      %v745 = vlaneseq
      %v746 = vshrl.u32 %v745, 7
      %v747 = vsub.s32 1, %v746
      %v748 = vrot.slane %v739, %v747
      %v749 = vlaneseq
      %v750 = vshrl.u32 %v749, 7
      %v751 = vsub.s32 2, %v750
      %v752 = vrot.slane %v739, %v751
      %v753 = vlaneseq
      %v754 = vshrl.u32 %v753, 7
      %v755 = vsub.s32 3, %v754
      %v756 = vrot.slane %v739, %v755
      %761 = vmatprep.subr.mxu0 %v676
      %762 = vmatpush1.msra.mxu0 %v675
      %763 = vmatprep.subr.mxu0 %v680
      %764 = vmatpush1.msra.mxu0 %v679
      %765 = vmatprep.subr.mxu0 %v684
      %766 = vmatpush1.msra.mxu0 %v683
      %767 = vmatprep.subr.mxu0 %v688
      %768 = vmatpush1.msra.mxu0 %v687
      %769 = vmatprep.subr.mxu0 %v692
      %770 = vmatpush1.msra.mxu0 %v691
      %771 = vmatprep.subr.mxu0 %v696
      %772 = vmatpush1.msra.mxu0 %v695
      %773 = vmatprep.subr.mxu0 %v700
      %774 = vmatpush1.msra.mxu0 %v699
      %775 = vmatprep.subr.mxu0 %v704
      %776 = vmatpush1.msra.mxu0 %v703
      %777 = vmatprep.subr.mxu0 %v708
      %778 = vmatpush1.msra.mxu0 %v707
      %779 = vmatprep.subr.mxu0 %v712
      %780 = vmatpush1.msra.mxu0 %v711
      %781 = vmatprep.subr.mxu0 %v716
      %782 = vmatpush1.msra.mxu0 %v715
      %783 = vmatprep.subr.mxu0 %v720
      %784 = vmatpush1.msra.mxu0 %v719
      %785 = vmatprep.subr.mxu0 %v724
      %786 = vmatpush1.msra.mxu0 %v723
      %787 = vmatprep.subr.mxu0 %v728
      %788 = vmatpush1.msra.mxu0 %v727
      %789 = vmatprep.subr.mxu0 %v732
      %790 = vmatpush1.msra.mxu0 %v731
      %791 = vmatprep.subr.mxu0 %v736
      %792 = vmatpush1.msra.mxu0 %v735
      %793 = vmatprep.subr.mxu0 0.0
      %794 = vmatpush1.msra.mxu0 0.0
      %795 = vmatprep.subr.mxu0 0.0
      %796 = vmatpush1.msra.mxu0 0.0
      %797 = vmatprep.subr.mxu0 0.0
      %798 = vmatpush1.msra.mxu0 0.0
      %799 = vmatprep.subr.mxu0 0.0
      %800 = vmatpush1.msra.mxu0 0.0
      %801 = vmatprep.subr.mxu0 0.0
      %802 = vmatpush1.msra.mxu0 0.0
      %803 = vmatprep.subr.mxu0 0.0
      %804 = vmatpush1.msra.mxu0 0.0
      %805 = vmatprep.subr.mxu0 0.0
      %806 = vmatpush1.msra.mxu0 0.0
      %807 = vmatprep.subr.mxu0 0.0
      %808 = vmatpush1.msra.mxu0 0.0
      %809 = vmatprep.subr.mxu0 0.0
      %810 = vmatpush1.msra.mxu0 0.0
      %811 = vmatprep.subr.mxu0 0.0
      %812 = vmatpush1.msra.mxu0 0.0
      %813 = vmatprep.subr.mxu0 0.0
      %814 = vmatpush1.msra.mxu0 0.0
      %815 = vmatprep.subr.mxu0 0.0
      %816 = vmatpush1.msra.mxu0 0.0
      %817 = vmatprep.subr.mxu0 0.0
      %818 = vmatpush1.msra.mxu0 0.0
      %819 = vmatprep.subr.mxu0 0.0
      %820 = vmatpush1.msra.mxu0 0.0
      %821 = vmatprep.subr.mxu0 0.0
      %822 = vmatpush1.msra.mxu0 0.0
      %823 = vmatprep.subr.mxu0 0.0
      %824 = vmatpush1.msra.mxu0 0.0
      %825 = vmatprep.mubr.f32.mxu0 0.0
      %826 = vmatmul.mubr.f32.gmra.mrb[0].mxu0 %v642
      %v827 = vpop.f32.mrb[0].mxu0
      %v828 = vadd.f32 %v744, %v827
      %v829 = vpop.f32.mrb[0].mxu0
      %v830 = vadd.f32 %v748, %v829
      %831 = vdwg.mxu0
      %832 = vmatprep.subr.mxu0 %v678
      %833 = vmatpush1.msra.mxu0 %v677
      %834 = vmatprep.subr.mxu0 %v682
      %835 = vmatpush1.msra.mxu0 %v681
      %836 = vmatprep.subr.mxu0 %v686
      %837 = vmatpush1.msra.mxu0 %v685
      %838 = vmatprep.subr.mxu0 %v690
      %839 = vmatpush1.msra.mxu0 %v689
      %840 = vmatprep.subr.mxu0 %v694
      %841 = vmatpush1.msra.mxu0 %v693
      %842 = vmatprep.subr.mxu0 %v698
      %843 = vmatpush1.msra.mxu0 %v697
      %844 = vmatprep.subr.mxu0 %v702
      %845 = vmatpush1.msra.mxu0 %v701
      %846 = vmatprep.subr.mxu0 %v706
      %847 = vmatpush1.msra.mxu0 %v705
      %848 = vmatprep.subr.mxu0 %v710
      %849 = vmatpush1.msra.mxu0 %v709
      %850 = vmatprep.subr.mxu0 %v714
      %851 = vmatpush1.msra.mxu0 %v713
      %852 = vmatprep.subr.mxu0 %v718
      %853 = vmatpush1.msra.mxu0 %v717
      %854 = vmatprep.subr.mxu0 %v722
      %855 = vmatpush1.msra.mxu0 %v721
      %856 = vmatprep.subr.mxu0 %v726
      %857 = vmatpush1.msra.mxu0 %v725
      %858 = vmatprep.subr.mxu0 %v730
      %859 = vmatpush1.msra.mxu0 %v729
      %860 = vmatprep.subr.mxu0 %v734
      %861 = vmatpush1.msra.mxu0 %v733
      %862 = vmatprep.subr.mxu0 %v738
      %863 = vmatpush1.msra.mxu0 %v737
      %864 = vmatprep.subr.mxu0 0.0
      %865 = vmatpush1.msra.mxu0 0.0
      %866 = vmatprep.subr.mxu0 0.0
      %867 = vmatpush1.msra.mxu0 0.0
      %868 = vmatprep.subr.mxu0 0.0
      %869 = vmatpush1.msra.mxu0 0.0
      %870 = vmatprep.subr.mxu0 0.0
      %871 = vmatpush1.msra.mxu0 0.0
      %872 = vmatprep.subr.mxu0 0.0
      %873 = vmatpush1.msra.mxu0 0.0
      %874 = vmatprep.subr.mxu0 0.0
      %875 = vmatpush1.msra.mxu0 0.0
      %876 = vmatprep.subr.mxu0 0.0
      %877 = vmatpush1.msra.mxu0 0.0
      %878 = vmatprep.subr.mxu0 0.0
      %879 = vmatpush1.msra.mxu0 0.0
      %880 = vmatprep.subr.mxu0 0.0
      %881 = vmatpush1.msra.mxu0 0.0
      %882 = vmatprep.subr.mxu0 0.0
      %883 = vmatpush1.msra.mxu0 0.0
      %884 = vmatprep.subr.mxu0 0.0
      %885 = vmatpush1.msra.mxu0 0.0
      %886 = vmatprep.subr.mxu0 0.0
      %887 = vmatpush1.msra.mxu0 0.0
      %888 = vmatprep.subr.mxu0 0.0
      %889 = vmatpush1.msra.mxu0 0.0
      %890 = vmatprep.subr.mxu0 0.0
      %891 = vmatpush1.msra.mxu0 0.0
      %892 = vmatprep.subr.mxu0 0.0
      %893 = vmatpush1.msra.mxu0 0.0
      %894 = vmatprep.subr.mxu0 0.0
      %895 = vmatpush1.msra.mxu0 0.0
      %896 = vmatprep.mubr.f32.mxu0 0.0
      %897 = vmatmul.mubr.f32.gmra.mrb[0].mxu0 %v642
      %v898 = vpop.f32.mrb[0].mxu0
      %v899 = vadd.f32 %v752, %v898
      %v900 = vpop.f32.mrb[0].mxu0
      %v901 = vadd.f32 %v756, %v900
      %902 = vdwg.mxu0
      %v903 = vsub.f32 0.0, %v828
      %v904 = vsub.f32 0.0, %v830
      %v905 = vsub.f32 0.0, %v899
      %v906 = vsub.f32 0.0, %v901
      %v907 = vmul.f32 %v903, 1.442695
      %v908 = vpow.pop %v907
      %v909 = vmul.f32 %v904, 1.442695
      %v910 = vpow.pop %v909
      %v911 = vmul.f32 %v905, 1.442695
      %v912 = vpow.pop %v911
      %v913 = vmul.f32 %v906, 1.442695
      %v914 = vpow.pop %v913
      %v915 = vadd.f32 %v908, 1.0
      %v916 = vadd.f32 %v910, 1.0
      %v917 = vadd.f32 %v912, 1.0
      %v918 = vadd.f32 %v914, 1.0
      %v919 = vrcp.pop %v915
      %v920 = vrcp.pop %v916
      %v921 = vrcp.pop %v917
      %v922 = vrcp.pop %v918
      %v923 = vmul.f32 %v828, %v919
      %v924 = vmul.f32 %v830, %v920
      %v925 = vmul.f32 %v899, %v921
      %v926 = vmul.f32 %v901, %v922
      %v927 = vsel %vm628, %v923, 0.0
      %v928 = vsel %vm628, %v924, 0.0
      %v929 = vadd.f32 %v927, %v928
      %v930 = vsel %vm628, %v925, 0.0
      %v931 = vadd.f32 %v929, %v930
      %v932 = vsel %vm628, %v926, 0.0
      %v933 = vadd.f32 %v931, %v932
      %934 = vadd.xlane.f32.xlu0 %v933
      %v935 = vpop.xlane.xlu0 %934
      %v936 = vrcp.pop 512.0
      %v937 = vmul.f32 %v935, %v936
      %v938 = vsub.f32 %v923, %v937
      %v939 = vsub.f32 %v924, %v937
      %v940 = vsub.f32 %v925, %v937
      %v941 = vsub.f32 %v926, %v937
      %v942 = vmul.f32 %v938, %v938
      %v943 = vmul.f32 %v939, %v939
      %v944 = vmul.f32 %v940, %v940
      %v945 = vmul.f32 %v941, %v941
      %v946 = vsel %vm628, %v942, 0.0
      %v947 = vsel %vm628, %v943, 0.0
      %v948 = vadd.f32 %v946, %v947
      %v949 = vsel %vm628, %v944, 0.0
      %v950 = vadd.f32 %v948, %v949
      %v951 = vsel %vm628, %v945, 0.0
      %v952 = vadd.f32 %v950, %v951
      %953 = vadd.xlane.f32.xlu0 %v952
      %v954 = vpop.xlane.xlu0 %953
      %v955 = vmul.f32 %v954, %v936
      %v956 = vadd.f32 %v955, 1e-05
      %v957 = vrsqrt.pop %v956
      %v958 = vmul.f32 %v938, %v957
      %v959 = vmul.f32 %v939, %v957
      %v960 = vmul.f32 %v940, %v957
      %v961 = vmul.f32 %v941, %v957
      %v962 = vld [vmem:[#allocation5] sm:$0xff]
      %v963 = vld [vmem:[#allocation5 + $0x8] sm:$0xff]
      %v964 = vld [vmem:[#allocation5 + $0x10] sm:$0xff]
      %v965 = vld [vmem:[#allocation5 + $0x18] sm:$0xff]
      %v966 = vld [vmem:[#allocation5 + $0x20] sm:$0xff]
      %v967 = vld [vmem:[#allocation5 + $0x28] sm:$0xff]
      %v968 = vld [vmem:[#allocation5 + $0x30] sm:$0xff]
      %v969 = vld [vmem:[#allocation5 + $0x38] sm:$0xff]
      %v970 = vld [vmem:[#allocation5 + $0x40] sm:$0xff]
      %v971 = vld [vmem:[#allocation5 + $0x48] sm:$0xff]
      %v972 = vld [vmem:[#allocation5 + $0x50] sm:$0xff]
      %v973 = vld [vmem:[#allocation5 + $0x58] sm:$0xff]
      %v974 = vld [vmem:[#allocation5 + $0x60] sm:$0xff]
      %v975 = vld [vmem:[#allocation5 + $0x68] sm:$0xff]
      %v976 = vld [vmem:[#allocation5 + $0x70] sm:$0xff]
      %v977 = vld [vmem:[#allocation5 + $0x78] sm:$0xff]
      %v978 = vld [vmem:[#allocation5 + $0x80] sm:$0xff]
      %v979 = vld [vmem:[#allocation5 + $0x88] sm:$0xff]
      %v980 = vld [vmem:[#allocation5 + $0x90] sm:$0xff]
      %v981 = vld [vmem:[#allocation5 + $0x98] sm:$0xff]
      %v982 = vld [vmem:[#allocation5 + $0xa0] sm:$0xff]
      %v983 = vld [vmem:[#allocation5 + $0xa8] sm:$0xff]
      %v984 = vld [vmem:[#allocation5 + $0xb0] sm:$0xff]
      %v985 = vld [vmem:[#allocation5 + $0xb8] sm:$0xff]
      %v986 = vld [vmem:[#allocation5 + $0xc0] sm:$0xff]
      %v987 = vld [vmem:[#allocation5 + $0xc8] sm:$0xff]
      %v988 = vld [vmem:[#allocation5 + $0xd0] sm:$0xff]
      %v989 = vld [vmem:[#allocation5 + $0xd8] sm:$0xff]
      %v990 = vld [vmem:[#allocation5 + $0xe0] sm:$0xff]
      %v991 = vld [vmem:[#allocation5 + $0xe8] sm:$0xff]
      %v992 = vld [vmem:[#allocation5 + $0xf0] sm:$0xff]
      %v993 = vld [vmem:[#allocation5 + $0xf8] sm:$0xff]
      %v994 = vld [vmem:[#allocation5 + $0x100] sm:$0xff]
      %v995 = vld [vmem:[#allocation5 + $0x108] sm:$0xff]
      %v996 = vld [vmem:[#allocation5 + $0x110] sm:$0xff]
      %v997 = vld [vmem:[#allocation5 + $0x118] sm:$0xff]
      %v998 = vld [vmem:[#allocation5 + $0x120] sm:$0xff]
      %v999 = vld [vmem:[#allocation5 + $0x128] sm:$0xff]
      %v1000 = vld [vmem:[#allocation5 + $0x130] sm:$0xff]
      %v1001 = vld [vmem:[#allocation5 + $0x138] sm:$0xff]
      %v1002 = vld [vmem:[#allocation5 + $0x140] sm:$0xff]
      %v1003 = vld [vmem:[#allocation5 + $0x148] sm:$0xff]
      %v1004 = vld [vmem:[#allocation5 + $0x150] sm:$0xff]
      %v1005 = vld [vmem:[#allocation5 + $0x158] sm:$0xff]
      %v1006 = vld [vmem:[#allocation5 + $0x160] sm:$0xff]
      %v1007 = vld [vmem:[#allocation5 + $0x168] sm:$0xff]
      %v1008 = vld [vmem:[#allocation5 + $0x170] sm:$0xff]
      %v1009 = vld [vmem:[#allocation5 + $0x178] sm:$0xff]
      %v1010 = vld [vmem:[#allocation5 + $0x180] sm:$0xff]
      %v1011 = vld [vmem:[#allocation5 + $0x188] sm:$0xff]
      %v1012 = vld [vmem:[#allocation5 + $0x190] sm:$0xff]
      %v1013 = vld [vmem:[#allocation5 + $0x198] sm:$0xff]
      %v1014 = vld [vmem:[#allocation5 + $0x1a0] sm:$0xff]
      %v1015 = vld [vmem:[#allocation5 + $0x1a8] sm:$0xff]
      %v1016 = vld [vmem:[#allocation5 + $0x1b0] sm:$0xff]
      %v1017 = vld [vmem:[#allocation5 + $0x1b8] sm:$0xff]
      %v1018 = vld [vmem:[#allocation5 + $0x1c0] sm:$0xff]
      %v1019 = vld [vmem:[#allocation5 + $0x1c8] sm:$0xff]
      %v1020 = vld [vmem:[#allocation5 + $0x1d0] sm:$0xff]
      %v1021 = vld [vmem:[#allocation5 + $0x1d8] sm:$0xff]
      %v1022 = vld [vmem:[#allocation5 + $0x1e0] sm:$0xff]
      %v1023 = vld [vmem:[#allocation5 + $0x1e8] sm:$0xff]
      %v1024 = vld [vmem:[#allocation5 + $0x1f0] sm:$0xff]
      %v1025 = vld [vmem:[#allocation5 + $0x1f8] sm:$0xff]
      %v1026 = vld [vmem:[#allocation5 + $0x200] sm:$0xff]
      %v1027 = vld [vmem:[#allocation5 + $0x208] sm:$0xff]
      %v1028 = vld [vmem:[#allocation5 + $0x210] sm:$0xff]
      %v1029 = vld [vmem:[#allocation5 + $0x218] sm:$0xff]
      %v1030 = vld [vmem:[#allocation5 + $0x220] sm:$0xff]
      %v1031 = vld [vmem:[#allocation5 + $0x228] sm:$0xff]
      %v1032 = vld [vmem:[#allocation5 + $0x230] sm:$0xff]
      %v1033 = vld [vmem:[#allocation5 + $0x238] sm:$0xff]
      %v1034 = vld [vmem:[#allocation5 + $0x240] sm:$0xff]
      %v1035 = vld [vmem:[#allocation5 + $0x248] sm:$0xff]
      %v1036 = vld [vmem:[#allocation5 + $0x250] sm:$0xff]
      %v1037 = vld [vmem:[#allocation5 + $0x258] sm:$0xff]
      %v1038 = vld [vmem:[#allocation5 + $0x260] sm:$0xff]
      %v1039 = vld [vmem:[#allocation5 + $0x268] sm:$0xff]
      %v1040 = vld [vmem:[#allocation5 + $0x270] sm:$0xff]
      %v1041 = vld [vmem:[#allocation5 + $0x278] sm:$0xff]
      %v1042 = vld [vmem:[#allocation5 + $0x280] sm:$0xff]
      %v1043 = vld [vmem:[#allocation5 + $0x288] sm:$0xff]
      %v1044 = vld [vmem:[#allocation5 + $0x290] sm:$0xff]
      %v1045 = vld [vmem:[#allocation5 + $0x298] sm:$0xff]
      %v1046 = vld [vmem:[#allocation5 + $0x2a0] sm:$0xff]
      %v1047 = vld [vmem:[#allocation5 + $0x2a8] sm:$0xff]
      %v1048 = vld [vmem:[#allocation5 + $0x2b0] sm:$0xff]
      %v1049 = vld [vmem:[#allocation5 + $0x2b8] sm:$0xff]
      %v1050 = vld [vmem:[#allocation5 + $0x2c0] sm:$0xff]
      %v1051 = vld [vmem:[#allocation5 + $0x2c8] sm:$0xff]
      %v1052 = vld [vmem:[#allocation5 + $0x2d0] sm:$0xff]
      %v1053 = vld [vmem:[#allocation5 + $0x2d8] sm:$0xff]
      %v1054 = vld [vmem:[#allocation5 + $0x2e0] sm:$0xff]
      %v1055 = vld [vmem:[#allocation5 + $0x2e8] sm:$0xff]
      %v1056 = vld [vmem:[#allocation5 + $0x2f0] sm:$0xff]
      %v1057 = vld [vmem:[#allocation5 + $0x2f8] sm:$0xff]
      %v1058 = vld [vmem:[#allocation5 + $0x300] sm:$0xff]
      %v1059 = vld [vmem:[#allocation5 + $0x308] sm:$0xff]
      %v1060 = vld [vmem:[#allocation5 + $0x310] sm:$0xff]
      %v1061 = vld [vmem:[#allocation5 + $0x318] sm:$0xff]
      %v1062 = vld [vmem:[#allocation5 + $0x320] sm:$0xff]
      %v1063 = vld [vmem:[#allocation5 + $0x328] sm:$0xff]
      %v1064 = vld [vmem:[#allocation5 + $0x330] sm:$0xff]
      %v1065 = vld [vmem:[#allocation5 + $0x338] sm:$0xff]
      %v1066 = vld [vmem:[#allocation5 + $0x340] sm:$0xff]
      %v1067 = vld [vmem:[#allocation5 + $0x348] sm:$0xff]
      %v1068 = vld [vmem:[#allocation5 + $0x350] sm:$0xff]
      %v1069 = vld [vmem:[#allocation5 + $0x358] sm:$0xff]
      %v1070 = vld [vmem:[#allocation5 + $0x360] sm:$0xff]
      %v1071 = vld [vmem:[#allocation5 + $0x368] sm:$0xff]
      %v1072 = vld [vmem:[#allocation5 + $0x370] sm:$0xff]
      %v1073 = vld [vmem:[#allocation5 + $0x378] sm:$0xff]
      %v1074 = vld [vmem:[#allocation5 + $0x380] sm:$0xff]
      %v1075 = vld [vmem:[#allocation5 + $0x388] sm:$0xff]
      %v1076 = vld [vmem:[#allocation5 + $0x390] sm:$0xff]
      %v1077 = vld [vmem:[#allocation5 + $0x398] sm:$0xff]
      %v1078 = vld [vmem:[#allocation5 + $0x3a0] sm:$0xff]
      %v1079 = vld [vmem:[#allocation5 + $0x3a8] sm:$0xff]
      %v1080 = vld [vmem:[#allocation5 + $0x3b0] sm:$0xff]
      %v1081 = vld [vmem:[#allocation5 + $0x3b8] sm:$0xff]
      %v1082 = vld [vmem:[#allocation5 + $0x3c0] sm:$0xff]
      %v1083 = vld [vmem:[#allocation5 + $0x3c8] sm:$0xff]
      %v1084 = vld [vmem:[#allocation5 + $0x3d0] sm:$0xff]
      %v1085 = vld [vmem:[#allocation5 + $0x3d8] sm:$0xff]
      %v1086 = vld [vmem:[#allocation5 + $0x3e0] sm:$0xff]
      %v1087 = vld [vmem:[#allocation5 + $0x3e8] sm:$0xff]
      %v1088 = vld [vmem:[#allocation5 + $0x3f0] sm:$0xff]
      %v1089 = vld [vmem:[#allocation5 + $0x3f8] sm:$0xff]
      %v1090 = vunpack.c.l.bf16 %v962
      %v1091 = vunpack.c.h.bf16 %v962
      %v1092 = vunpack.c.l.bf16 %v963
      %v1093 = vunpack.c.h.bf16 %v963
      %v1094 = vunpack.c.l.bf16 %v964
      %v1095 = vunpack.c.h.bf16 %v964
      %v1096 = vunpack.c.l.bf16 %v965
      %v1097 = vunpack.c.h.bf16 %v965
      %v1098 = vunpack.c.l.bf16 %v966
      %v1099 = vunpack.c.h.bf16 %v966
      %v1100 = vunpack.c.l.bf16 %v967
      %v1101 = vunpack.c.h.bf16 %v967
      %v1102 = vunpack.c.l.bf16 %v968
      %v1103 = vunpack.c.h.bf16 %v968
      %v1104 = vunpack.c.l.bf16 %v969
      %v1105 = vunpack.c.h.bf16 %v969
      %v1106 = vunpack.c.l.bf16 %v970
      %v1107 = vunpack.c.h.bf16 %v970
      %v1108 = vunpack.c.l.bf16 %v971
      %v1109 = vunpack.c.h.bf16 %v971
      %v1110 = vunpack.c.l.bf16 %v972
      %v1111 = vunpack.c.h.bf16 %v972
      %v1112 = vunpack.c.l.bf16 %v973
      %v1113 = vunpack.c.h.bf16 %v973
      %v1114 = vunpack.c.l.bf16 %v974
      %v1115 = vunpack.c.h.bf16 %v974
      %v1116 = vunpack.c.l.bf16 %v975
      %v1117 = vunpack.c.h.bf16 %v975
      %v1118 = vunpack.c.l.bf16 %v976
      %v1119 = vunpack.c.h.bf16 %v976
      %v1120 = vunpack.c.l.bf16 %v977
      %v1121 = vunpack.c.h.bf16 %v977
      %v1122 = vunpack.c.l.bf16 %v978
      %v1123 = vunpack.c.h.bf16 %v978
      %v1124 = vunpack.c.l.bf16 %v979
      %v1125 = vunpack.c.h.bf16 %v979
      %v1126 = vunpack.c.l.bf16 %v980
      %v1127 = vunpack.c.h.bf16 %v980
      %v1128 = vunpack.c.l.bf16 %v981
      %v1129 = vunpack.c.h.bf16 %v981
      %v1130 = vunpack.c.l.bf16 %v982
      %v1131 = vunpack.c.h.bf16 %v982
      %v1132 = vunpack.c.l.bf16 %v983
      %v1133 = vunpack.c.h.bf16 %v983
      %v1134 = vunpack.c.l.bf16 %v984
      %v1135 = vunpack.c.h.bf16 %v984
      %v1136 = vunpack.c.l.bf16 %v985
      %v1137 = vunpack.c.h.bf16 %v985
      %v1138 = vunpack.c.l.bf16 %v986
      %v1139 = vunpack.c.h.bf16 %v986
      %v1140 = vunpack.c.l.bf16 %v987
      %v1141 = vunpack.c.h.bf16 %v987
      %v1142 = vunpack.c.l.bf16 %v988
      %v1143 = vunpack.c.h.bf16 %v988
      %v1144 = vunpack.c.l.bf16 %v989
      %v1145 = vunpack.c.h.bf16 %v989
      %v1146 = vunpack.c.l.bf16 %v990
      %v1147 = vunpack.c.h.bf16 %v990
      %v1148 = vunpack.c.l.bf16 %v991
      %v1149 = vunpack.c.h.bf16 %v991
      %v1150 = vunpack.c.l.bf16 %v992
      %v1151 = vunpack.c.h.bf16 %v992
      %v1152 = vunpack.c.l.bf16 %v993
      %v1153 = vunpack.c.h.bf16 %v993
      %v1154 = vunpack.c.l.bf16 %v994
      %v1155 = vunpack.c.h.bf16 %v994
      %v1156 = vunpack.c.l.bf16 %v995
      %v1157 = vunpack.c.h.bf16 %v995
      %v1158 = vunpack.c.l.bf16 %v996
      %v1159 = vunpack.c.h.bf16 %v996
      %v1160 = vunpack.c.l.bf16 %v997
      %v1161 = vunpack.c.h.bf16 %v997
      %v1162 = vunpack.c.l.bf16 %v998
      %v1163 = vunpack.c.h.bf16 %v998
      %v1164 = vunpack.c.l.bf16 %v999
      %v1165 = vunpack.c.h.bf16 %v999
      %v1166 = vunpack.c.l.bf16 %v1000
      %v1167 = vunpack.c.h.bf16 %v1000
      %v1168 = vunpack.c.l.bf16 %v1001
      %v1169 = vunpack.c.h.bf16 %v1001
      %v1170 = vunpack.c.l.bf16 %v1002
      %v1171 = vunpack.c.h.bf16 %v1002
      %v1172 = vunpack.c.l.bf16 %v1003
      %v1173 = vunpack.c.h.bf16 %v1003
      %v1174 = vunpack.c.l.bf16 %v1004
      %v1175 = vunpack.c.h.bf16 %v1004
      %v1176 = vunpack.c.l.bf16 %v1005
      %v1177 = vunpack.c.h.bf16 %v1005
      %v1178 = vunpack.c.l.bf16 %v1006
      %v1179 = vunpack.c.h.bf16 %v1006
      %v1180 = vunpack.c.l.bf16 %v1007
      %v1181 = vunpack.c.h.bf16 %v1007
      %v1182 = vunpack.c.l.bf16 %v1008
      %v1183 = vunpack.c.h.bf16 %v1008
      %v1184 = vunpack.c.l.bf16 %v1009
      %v1185 = vunpack.c.h.bf16 %v1009
      %v1186 = vunpack.c.l.bf16 %v1010
      %v1187 = vunpack.c.h.bf16 %v1010
      %v1188 = vunpack.c.l.bf16 %v1011
      %v1189 = vunpack.c.h.bf16 %v1011
      %v1190 = vunpack.c.l.bf16 %v1012
      %v1191 = vunpack.c.h.bf16 %v1012
      %v1192 = vunpack.c.l.bf16 %v1013
      %v1193 = vunpack.c.h.bf16 %v1013
      %v1194 = vunpack.c.l.bf16 %v1014
      %v1195 = vunpack.c.h.bf16 %v1014
      %v1196 = vunpack.c.l.bf16 %v1015
      %v1197 = vunpack.c.h.bf16 %v1015
      %v1198 = vunpack.c.l.bf16 %v1016
      %v1199 = vunpack.c.h.bf16 %v1016
      %v1200 = vunpack.c.l.bf16 %v1017
      %v1201 = vunpack.c.h.bf16 %v1017
      %v1202 = vunpack.c.l.bf16 %v1018
      %v1203 = vunpack.c.h.bf16 %v1018
      %v1204 = vunpack.c.l.bf16 %v1019
      %v1205 = vunpack.c.h.bf16 %v1019
      %v1206 = vunpack.c.l.bf16 %v1020
      %v1207 = vunpack.c.h.bf16 %v1020
      %v1208 = vunpack.c.l.bf16 %v1021
      %v1209 = vunpack.c.h.bf16 %v1021
      %v1210 = vunpack.c.l.bf16 %v1022
      %v1211 = vunpack.c.h.bf16 %v1022
      %v1212 = vunpack.c.l.bf16 %v1023
      %v1213 = vunpack.c.h.bf16 %v1023
      %v1214 = vunpack.c.l.bf16 %v1024
      %v1215 = vunpack.c.h.bf16 %v1024
      %v1216 = vunpack.c.l.bf16 %v1025
      %v1217 = vunpack.c.h.bf16 %v1025
      %v1218 = vunpack.c.l.bf16 %v1026
      %v1219 = vunpack.c.h.bf16 %v1026
      %v1220 = vunpack.c.l.bf16 %v1027
      %v1221 = vunpack.c.h.bf16 %v1027
      %v1222 = vunpack.c.l.bf16 %v1028
      %v1223 = vunpack.c.h.bf16 %v1028
      %v1224 = vunpack.c.l.bf16 %v1029
      %v1225 = vunpack.c.h.bf16 %v1029
      %v1226 = vunpack.c.l.bf16 %v1030
      %v1227 = vunpack.c.h.bf16 %v1030
      %v1228 = vunpack.c.l.bf16 %v1031
      %v1229 = vunpack.c.h.bf16 %v1031
      %v1230 = vunpack.c.l.bf16 %v1032
      %v1231 = vunpack.c.h.bf16 %v1032
      %v1232 = vunpack.c.l.bf16 %v1033
      %v1233 = vunpack.c.h.bf16 %v1033
      %v1234 = vunpack.c.l.bf16 %v1034
      %v1235 = vunpack.c.h.bf16 %v1034
      %v1236 = vunpack.c.l.bf16 %v1035
      %v1237 = vunpack.c.h.bf16 %v1035
      %v1238 = vunpack.c.l.bf16 %v1036
      %v1239 = vunpack.c.h.bf16 %v1036
      %v1240 = vunpack.c.l.bf16 %v1037
      %v1241 = vunpack.c.h.bf16 %v1037
      %v1242 = vunpack.c.l.bf16 %v1038
      %v1243 = vunpack.c.h.bf16 %v1038
      %v1244 = vunpack.c.l.bf16 %v1039
      %v1245 = vunpack.c.h.bf16 %v1039
      %v1246 = vunpack.c.l.bf16 %v1040
      %v1247 = vunpack.c.h.bf16 %v1040
      %v1248 = vunpack.c.l.bf16 %v1041
      %v1249 = vunpack.c.h.bf16 %v1041
      %v1250 = vunpack.c.l.bf16 %v1042
      %v1251 = vunpack.c.h.bf16 %v1042
      %v1252 = vunpack.c.l.bf16 %v1043
      %v1253 = vunpack.c.h.bf16 %v1043
      %v1254 = vunpack.c.l.bf16 %v1044
      %v1255 = vunpack.c.h.bf16 %v1044
      %v1256 = vunpack.c.l.bf16 %v1045
      %v1257 = vunpack.c.h.bf16 %v1045
      %v1258 = vunpack.c.l.bf16 %v1046
      %v1259 = vunpack.c.h.bf16 %v1046
      %v1260 = vunpack.c.l.bf16 %v1047
      %v1261 = vunpack.c.h.bf16 %v1047
      %v1262 = vunpack.c.l.bf16 %v1048
      %v1263 = vunpack.c.h.bf16 %v1048
      %v1264 = vunpack.c.l.bf16 %v1049
      %v1265 = vunpack.c.h.bf16 %v1049
      %v1266 = vunpack.c.l.bf16 %v1050
      %v1267 = vunpack.c.h.bf16 %v1050
      %v1268 = vunpack.c.l.bf16 %v1051
      %v1269 = vunpack.c.h.bf16 %v1051
      %v1270 = vunpack.c.l.bf16 %v1052
      %v1271 = vunpack.c.h.bf16 %v1052
      %v1272 = vunpack.c.l.bf16 %v1053
      %v1273 = vunpack.c.h.bf16 %v1053
      %v1274 = vunpack.c.l.bf16 %v1054
      %v1275 = vunpack.c.h.bf16 %v1054
      %v1276 = vunpack.c.l.bf16 %v1055
      %v1277 = vunpack.c.h.bf16 %v1055
      %v1278 = vunpack.c.l.bf16 %v1056
      %v1279 = vunpack.c.h.bf16 %v1056
      %v1280 = vunpack.c.l.bf16 %v1057
      %v1281 = vunpack.c.h.bf16 %v1057
      %v1282 = vunpack.c.l.bf16 %v1058
      %v1283 = vunpack.c.h.bf16 %v1058
      %v1284 = vunpack.c.l.bf16 %v1059
      %v1285 = vunpack.c.h.bf16 %v1059
      %v1286 = vunpack.c.l.bf16 %v1060
      %v1287 = vunpack.c.h.bf16 %v1060
      %v1288 = vunpack.c.l.bf16 %v1061
      %v1289 = vunpack.c.h.bf16 %v1061
      %v1290 = vunpack.c.l.bf16 %v1062
      %v1291 = vunpack.c.h.bf16 %v1062
      %v1292 = vunpack.c.l.bf16 %v1063
      %v1293 = vunpack.c.h.bf16 %v1063
      %v1294 = vunpack.c.l.bf16 %v1064
      %v1295 = vunpack.c.h.bf16 %v1064
      %v1296 = vunpack.c.l.bf16 %v1065
      %v1297 = vunpack.c.h.bf16 %v1065
      %v1298 = vunpack.c.l.bf16 %v1066
      %v1299 = vunpack.c.h.bf16 %v1066
      %v1300 = vunpack.c.l.bf16 %v1067
      %v1301 = vunpack.c.h.bf16 %v1067
      %v1302 = vunpack.c.l.bf16 %v1068
      %v1303 = vunpack.c.h.bf16 %v1068
      %v1304 = vunpack.c.l.bf16 %v1069
      %v1305 = vunpack.c.h.bf16 %v1069
      %v1306 = vunpack.c.l.bf16 %v1070
      %v1307 = vunpack.c.h.bf16 %v1070
      %v1308 = vunpack.c.l.bf16 %v1071
      %v1309 = vunpack.c.h.bf16 %v1071
      %v1310 = vunpack.c.l.bf16 %v1072
      %v1311 = vunpack.c.h.bf16 %v1072
      %v1312 = vunpack.c.l.bf16 %v1073
      %v1313 = vunpack.c.h.bf16 %v1073
      %v1314 = vunpack.c.l.bf16 %v1074
      %v1315 = vunpack.c.h.bf16 %v1074
      %v1316 = vunpack.c.l.bf16 %v1075
      %v1317 = vunpack.c.h.bf16 %v1075
      %v1318 = vunpack.c.l.bf16 %v1076
      %v1319 = vunpack.c.h.bf16 %v1076
      %v1320 = vunpack.c.l.bf16 %v1077
      %v1321 = vunpack.c.h.bf16 %v1077
      %v1322 = vunpack.c.l.bf16 %v1078
      %v1323 = vunpack.c.h.bf16 %v1078
      %v1324 = vunpack.c.l.bf16 %v1079
      %v1325 = vunpack.c.h.bf16 %v1079
      %v1326 = vunpack.c.l.bf16 %v1080
      %v1327 = vunpack.c.h.bf16 %v1080
      %v1328 = vunpack.c.l.bf16 %v1081
      %v1329 = vunpack.c.h.bf16 %v1081
      %v1330 = vunpack.c.l.bf16 %v1082
      %v1331 = vunpack.c.h.bf16 %v1082
      %v1332 = vunpack.c.l.bf16 %v1083
      %v1333 = vunpack.c.h.bf16 %v1083
      %v1334 = vunpack.c.l.bf16 %v1084
      %v1335 = vunpack.c.h.bf16 %v1084
      %v1336 = vunpack.c.l.bf16 %v1085
      %v1337 = vunpack.c.h.bf16 %v1085
      %v1338 = vunpack.c.l.bf16 %v1086
      %v1339 = vunpack.c.h.bf16 %v1086
      %v1340 = vunpack.c.l.bf16 %v1087
      %v1341 = vunpack.c.h.bf16 %v1087
      %v1342 = vunpack.c.l.bf16 %v1088
      %v1343 = vunpack.c.h.bf16 %v1088
      %v1344 = vunpack.c.l.bf16 %v1089
      %v1345 = vunpack.c.h.bf16 %v1089
      %v1346 = vld [vmem:[%s6] sm:$0xf]
      %v1348 = vlaneseq
      %v1349 = vshrl.u32 %v1348, 7
      %v1350 = vsub.s32 0, %v1349
      %v1351 = vrot.slane %v1346, %v1350
      %v1352 = vlaneseq
      %v1353 = vshrl.u32 %v1352, 7
      %v1354 = vsub.s32 1, %v1353
      %v1355 = vrot.slane %v1346, %v1354
      %v1356 = vlaneseq
      %v1357 = vshrl.u32 %v1356, 7
      %v1358 = vsub.s32 2, %v1357
      %v1359 = vrot.slane %v1346, %v1358
      %v1360 = vlaneseq
      %v1361 = vshrl.u32 %v1360, 7
      %v1362 = vsub.s32 3, %v1361
      %v1363 = vrot.slane %v1346, %v1362
      %1368 = vmatprep.subr.mxu0 %v1091
      %1369 = vmatpush1.msra.mxu0 %v1090
      %1370 = vmatprep.subr.mxu0 %v1095
      %1371 = vmatpush1.msra.mxu0 %v1094
      %1372 = vmatprep.subr.mxu0 %v1099
      %1373 = vmatpush1.msra.mxu0 %v1098
      %1374 = vmatprep.subr.mxu0 %v1103
      %1375 = vmatpush1.msra.mxu0 %v1102
      %1376 = vmatprep.subr.mxu0 %v1107
      %1377 = vmatpush1.msra.mxu0 %v1106
      %1378 = vmatprep.subr.mxu0 %v1111
      %1379 = vmatpush1.msra.mxu0 %v1110
      %1380 = vmatprep.subr.mxu0 %v1115
      %1381 = vmatpush1.msra.mxu0 %v1114
      %1382 = vmatprep.subr.mxu0 %v1119
      %1383 = vmatpush1.msra.mxu0 %v1118
      %1384 = vmatprep.subr.mxu0 %v1123
      %1385 = vmatpush1.msra.mxu0 %v1122
      %1386 = vmatprep.subr.mxu0 %v1127
      %1387 = vmatpush1.msra.mxu0 %v1126
      %1388 = vmatprep.subr.mxu0 %v1131
      %1389 = vmatpush1.msra.mxu0 %v1130
      %1390 = vmatprep.subr.mxu0 %v1135
      %1391 = vmatpush1.msra.mxu0 %v1134
      %1392 = vmatprep.subr.mxu0 %v1139
      %1393 = vmatpush1.msra.mxu0 %v1138
      %1394 = vmatprep.subr.mxu0 %v1143
      %1395 = vmatpush1.msra.mxu0 %v1142
      %1396 = vmatprep.subr.mxu0 %v1147
      %1397 = vmatpush1.msra.mxu0 %v1146
      %1398 = vmatprep.subr.mxu0 %v1151
      %1399 = vmatpush1.msra.mxu0 %v1150
      %1400 = vmatprep.subr.mxu0 %v1155
      %1401 = vmatpush1.msra.mxu0 %v1154
      %1402 = vmatprep.subr.mxu0 %v1159
      %1403 = vmatpush1.msra.mxu0 %v1158
      %1404 = vmatprep.subr.mxu0 %v1163
      %1405 = vmatpush1.msra.mxu0 %v1162
      %1406 = vmatprep.subr.mxu0 %v1167
      %1407 = vmatpush1.msra.mxu0 %v1166
      %1408 = vmatprep.subr.mxu0 %v1171
      %1409 = vmatpush1.msra.mxu0 %v1170
      %1410 = vmatprep.subr.mxu0 %v1175
      %1411 = vmatpush1.msra.mxu0 %v1174
      %1412 = vmatprep.subr.mxu0 %v1179
      %1413 = vmatpush1.msra.mxu0 %v1178
      %1414 = vmatprep.subr.mxu0 %v1183
      %1415 = vmatpush1.msra.mxu0 %v1182
      %1416 = vmatprep.subr.mxu0 %v1187
      %1417 = vmatpush1.msra.mxu0 %v1186
      %1418 = vmatprep.subr.mxu0 %v1191
      %1419 = vmatpush1.msra.mxu0 %v1190
      %1420 = vmatprep.subr.mxu0 %v1195
      %1421 = vmatpush1.msra.mxu0 %v1194
      %1422 = vmatprep.subr.mxu0 %v1199
      %1423 = vmatpush1.msra.mxu0 %v1198
      %1424 = vmatprep.subr.mxu0 %v1203
      %1425 = vmatpush1.msra.mxu0 %v1202
      %1426 = vmatprep.subr.mxu0 %v1207
      %1427 = vmatpush1.msra.mxu0 %v1206
      %1428 = vmatprep.subr.mxu0 %v1211
      %1429 = vmatpush1.msra.mxu0 %v1210
      %1430 = vmatprep.subr.mxu0 %v1215
      %1431 = vmatpush1.msra.mxu0 %v1214
      %1432 = vmatprep.mubr.f32.mxu0 %v959
      %1433 = vmatmul.mubr.f32.gmra.mrb[0].mxu0 %v958
      %v1434 = vpop.f32.mrb[0].mxu0
      %v1435 = vadd.f32 %v1351, %v1434
      %v1436 = vpop.f32.mrb[0].mxu0
      %v1437 = vadd.f32 %v1355, %v1436
      %1438 = vdwg.mxu0
      %1439 = vmatprep.subr.mxu0 %v1219
      %1440 = vmatpush1.msra.mxu0 %v1218
      %1441 = vmatprep.subr.mxu0 %v1223
      %1442 = vmatpush1.msra.mxu0 %v1222
      %1443 = vmatprep.subr.mxu0 %v1227
      %1444 = vmatpush1.msra.mxu0 %v1226
      %1445 = vmatprep.subr.mxu0 %v1231
      %1446 = vmatpush1.msra.mxu0 %v1230
      %1447 = vmatprep.subr.mxu0 %v1235
      %1448 = vmatpush1.msra.mxu0 %v1234
      %1449 = vmatprep.subr.mxu0 %v1239
      %1450 = vmatpush1.msra.mxu0 %v1238
      %1451 = vmatprep.subr.mxu0 %v1243
      %1452 = vmatpush1.msra.mxu0 %v1242
      %1453 = vmatprep.subr.mxu0 %v1247
      %1454 = vmatpush1.msra.mxu0 %v1246
      %1455 = vmatprep.subr.mxu0 %v1251
      %1456 = vmatpush1.msra.mxu0 %v1250
      %1457 = vmatprep.subr.mxu0 %v1255
      %1458 = vmatpush1.msra.mxu0 %v1254
      %1459 = vmatprep.subr.mxu0 %v1259
      %1460 = vmatpush1.msra.mxu0 %v1258
      %1461 = vmatprep.subr.mxu0 %v1263
      %1462 = vmatpush1.msra.mxu0 %v1262
      %1463 = vmatprep.subr.mxu0 %v1267
      %1464 = vmatpush1.msra.mxu0 %v1266
      %1465 = vmatprep.subr.mxu0 %v1271
      %1466 = vmatpush1.msra.mxu0 %v1270
      %1467 = vmatprep.subr.mxu0 %v1275
      %1468 = vmatpush1.msra.mxu0 %v1274
      %1469 = vmatprep.subr.mxu0 %v1279
      %1470 = vmatpush1.msra.mxu0 %v1278
      %1471 = vmatprep.subr.mxu0 %v1283
      %1472 = vmatpush1.msra.mxu0 %v1282
      %1473 = vmatprep.subr.mxu0 %v1287
      %1474 = vmatpush1.msra.mxu0 %v1286
      %1475 = vmatprep.subr.mxu0 %v1291
      %1476 = vmatpush1.msra.mxu0 %v1290
      %1477 = vmatprep.subr.mxu0 %v1295
      %1478 = vmatpush1.msra.mxu0 %v1294
      %1479 = vmatprep.subr.mxu0 %v1299
      %1480 = vmatpush1.msra.mxu0 %v1298
      %1481 = vmatprep.subr.mxu0 %v1303
      %1482 = vmatpush1.msra.mxu0 %v1302
      %1483 = vmatprep.subr.mxu0 %v1307
      %1484 = vmatpush1.msra.mxu0 %v1306
      %1485 = vmatprep.subr.mxu0 %v1311
      %1486 = vmatpush1.msra.mxu0 %v1310
      %1487 = vmatprep.subr.mxu0 %v1315
      %1488 = vmatpush1.msra.mxu0 %v1314
      %1489 = vmatprep.subr.mxu0 %v1319
      %1490 = vmatpush1.msra.mxu0 %v1318
      %1491 = vmatprep.subr.mxu0 %v1323
      %1492 = vmatpush1.msra.mxu0 %v1322
      %1493 = vmatprep.subr.mxu0 %v1327
      %1494 = vmatpush1.msra.mxu0 %v1326
      %1495 = vmatprep.subr.mxu0 %v1331
      %1496 = vmatpush1.msra.mxu0 %v1330
      %1497 = vmatprep.subr.mxu0 %v1335
      %1498 = vmatpush1.msra.mxu0 %v1334
      %1499 = vmatprep.subr.mxu0 %v1339
      %1500 = vmatpush1.msra.mxu0 %v1338
      %1501 = vmatprep.subr.mxu0 %v1343
      %1502 = vmatpush1.msra.mxu0 %v1342
      %1503 = vmatprep.mubr.f32.mxu0 %v961
      %1504 = vmatmul.mubr.f32.gmra.mrb[0].mxu0 %v960
      %v1505 = vpop.f32.mrb[0].mxu0
      %v1506 = vadd.f32 %v1435, %v1505
      %v1507 = vpop.f32.mrb[0].mxu0
      %v1508 = vadd.f32 %v1437, %v1507
      %1509 = vdwg.mxu0
      %1510 = vmatprep.subr.mxu0 %v1093
      %1511 = vmatpush1.msra.mxu0 %v1092
      %1512 = vmatprep.subr.mxu0 %v1097
      %1513 = vmatpush1.msra.mxu0 %v1096
      %1514 = vmatprep.subr.mxu0 %v1101
      %1515 = vmatpush1.msra.mxu0 %v1100
      %1516 = vmatprep.subr.mxu0 %v1105
      %1517 = vmatpush1.msra.mxu0 %v1104
      %1518 = vmatprep.subr.mxu0 %v1109
      %1519 = vmatpush1.msra.mxu0 %v1108
      %1520 = vmatprep.subr.mxu0 %v1113
      %1521 = vmatpush1.msra.mxu0 %v1112
      %1522 = vmatprep.subr.mxu0 %v1117
      %1523 = vmatpush1.msra.mxu0 %v1116
      %1524 = vmatprep.subr.mxu0 %v1121
      %1525 = vmatpush1.msra.mxu0 %v1120
      %1526 = vmatprep.subr.mxu0 %v1125
      %1527 = vmatpush1.msra.mxu0 %v1124
      %1528 = vmatprep.subr.mxu0 %v1129
      %1529 = vmatpush1.msra.mxu0 %v1128
      %1530 = vmatprep.subr.mxu0 %v1133
      %1531 = vmatpush1.msra.mxu0 %v1132
      %1532 = vmatprep.subr.mxu0 %v1137
      %1533 = vmatpush1.msra.mxu0 %v1136
      %1534 = vmatprep.subr.mxu0 %v1141
      %1535 = vmatpush1.msra.mxu0 %v1140
      %1536 = vmatprep.subr.mxu0 %v1145
      %1537 = vmatpush1.msra.mxu0 %v1144
      %1538 = vmatprep.subr.mxu0 %v1149
      %1539 = vmatpush1.msra.mxu0 %v1148
      %1540 = vmatprep.subr.mxu0 %v1153
      %1541 = vmatpush1.msra.mxu0 %v1152
      %1542 = vmatprep.subr.mxu0 %v1157
      %1543 = vmatpush1.msra.mxu0 %v1156
      %1544 = vmatprep.subr.mxu0 %v1161
      %1545 = vmatpush1.msra.mxu0 %v1160
      %1546 = vmatprep.subr.mxu0 %v1165
      %1547 = vmatpush1.msra.mxu0 %v1164
      %1548 = vmatprep.subr.mxu0 %v1169
      %1549 = vmatpush1.msra.mxu0 %v1168
      %1550 = vmatprep.subr.mxu0 %v1173
      %1551 = vmatpush1.msra.mxu0 %v1172
      %1552 = vmatprep.subr.mxu0 %v1177
      %1553 = vmatpush1.msra.mxu0 %v1176
      %1554 = vmatprep.subr.mxu0 %v1181
      %1555 = vmatpush1.msra.mxu0 %v1180
      %1556 = vmatprep.subr.mxu0 %v1185
      %1557 = vmatpush1.msra.mxu0 %v1184
      %1558 = vmatprep.subr.mxu0 %v1189
      %1559 = vmatpush1.msra.mxu0 %v1188
      %1560 = vmatprep.subr.mxu0 %v1193
      %1561 = vmatpush1.msra.mxu0 %v1192
      %1562 = vmatprep.subr.mxu0 %v1197
      %1563 = vmatpush1.msra.mxu0 %v1196
      %1564 = vmatprep.subr.mxu0 %v1201
      %1565 = vmatpush1.msra.mxu0 %v1200
      %1566 = vmatprep.subr.mxu0 %v1205
      %1567 = vmatpush1.msra.mxu0 %v1204
      %1568 = vmatprep.subr.mxu0 %v1209
      %1569 = vmatpush1.msra.mxu0 %v1208
      %1570 = vmatprep.subr.mxu0 %v1213
      %1571 = vmatpush1.msra.mxu0 %v1212
      %1572 = vmatprep.subr.mxu0 %v1217
      %1573 = vmatpush1.msra.mxu0 %v1216
      %1574 = vmatprep.mubr.f32.mxu0 %v959
      %1575 = vmatmul.mubr.f32.gmra.mrb[0].mxu0 %v958
      %v1576 = vpop.f32.mrb[0].mxu0
      %v1577 = vadd.f32 %v1359, %v1576
      %v1578 = vpop.f32.mrb[0].mxu0
      %v1579 = vadd.f32 %v1363, %v1578
      %1580 = vdwg.mxu0
      %1581 = vmatprep.subr.mxu0 %v1221
      %1582 = vmatpush1.msra.mxu0 %v1220
      %1583 = vmatprep.subr.mxu0 %v1225
      %1584 = vmatpush1.msra.mxu0 %v1224
      %1585 = vmatprep.subr.mxu0 %v1229
      %1586 = vmatpush1.msra.mxu0 %v1228
      %1587 = vmatprep.subr.mxu0 %v1233
      %1588 = vmatpush1.msra.mxu0 %v1232
      %1589 = vmatprep.subr.mxu0 %v1237
      %1590 = vmatpush1.msra.mxu0 %v1236
      %1591 = vmatprep.subr.mxu0 %v1241
      %1592 = vmatpush1.msra.mxu0 %v1240
      %1593 = vmatprep.subr.mxu0 %v1245
      %1594 = vmatpush1.msra.mxu0 %v1244
      %1595 = vmatprep.subr.mxu0 %v1249
      %1596 = vmatpush1.msra.mxu0 %v1248
      %1597 = vmatprep.subr.mxu0 %v1253
      %1598 = vmatpush1.msra.mxu0 %v1252
      %1599 = vmatprep.subr.mxu0 %v1257
      %1600 = vmatpush1.msra.mxu0 %v1256
      %1601 = vmatprep.subr.mxu0 %v1261
      %1602 = vmatpush1.msra.mxu0 %v1260
      %1603 = vmatprep.subr.mxu0 %v1265
      %1604 = vmatpush1.msra.mxu0 %v1264
      %1605 = vmatprep.subr.mxu0 %v1269
      %1606 = vmatpush1.msra.mxu0 %v1268
      %1607 = vmatprep.subr.mxu0 %v1273
      %1608 = vmatpush1.msra.mxu0 %v1272
      %1609 = vmatprep.subr.mxu0 %v1277
      %1610 = vmatpush1.msra.mxu0 %v1276
      %1611 = vmatprep.subr.mxu0 %v1281
      %1612 = vmatpush1.msra.mxu0 %v1280
      %1613 = vmatprep.subr.mxu0 %v1285
      %1614 = vmatpush1.msra.mxu0 %v1284
      %1615 = vmatprep.subr.mxu0 %v1289
      %1616 = vmatpush1.msra.mxu0 %v1288
      %1617 = vmatprep.subr.mxu0 %v1293
      %1618 = vmatpush1.msra.mxu0 %v1292
      %1619 = vmatprep.subr.mxu0 %v1297
      %1620 = vmatpush1.msra.mxu0 %v1296
      %1621 = vmatprep.subr.mxu0 %v1301
      %1622 = vmatpush1.msra.mxu0 %v1300
      %1623 = vmatprep.subr.mxu0 %v1305
      %1624 = vmatpush1.msra.mxu0 %v1304
      %1625 = vmatprep.subr.mxu0 %v1309
      %1626 = vmatpush1.msra.mxu0 %v1308
      %1627 = vmatprep.subr.mxu0 %v1313
      %1628 = vmatpush1.msra.mxu0 %v1312
      %1629 = vmatprep.subr.mxu0 %v1317
      %1630 = vmatpush1.msra.mxu0 %v1316
      %1631 = vmatprep.subr.mxu0 %v1321
      %1632 = vmatpush1.msra.mxu0 %v1320
      %1633 = vmatprep.subr.mxu0 %v1325
      %1634 = vmatpush1.msra.mxu0 %v1324
      %1635 = vmatprep.subr.mxu0 %v1329
      %1636 = vmatpush1.msra.mxu0 %v1328
      %1637 = vmatprep.subr.mxu0 %v1333
      %1638 = vmatpush1.msra.mxu0 %v1332
      %1639 = vmatprep.subr.mxu0 %v1337
      %1640 = vmatpush1.msra.mxu0 %v1336
      %1641 = vmatprep.subr.mxu0 %v1341
      %1642 = vmatpush1.msra.mxu0 %v1340
      %1643 = vmatprep.subr.mxu0 %v1345
      %1644 = vmatpush1.msra.mxu0 %v1344
      %1645 = vmatprep.mubr.f32.mxu0 %v961
      %1646 = vmatmul.mubr.f32.gmra.mrb[0].mxu0 %v960
      %v1647 = vpop.f32.mrb[0].mxu0
      %v1648 = vadd.f32 %v1577, %v1647
      %v1649 = vpop.f32.mrb[0].mxu0
      %v1650 = vadd.f32 %v1579, %v1649
      %1651 = vdwg.mxu0
      %v1652 = vsub.f32 0.0, %v1506
      %v1653 = vsub.f32 0.0, %v1508
      %v1654 = vsub.f32 0.0, %v1648
      %v1655 = vsub.f32 0.0, %v1650
      %v1656 = vmul.f32 %v1652, 1.442695
      %v1657 = vpow.pop %v1656
      %v1658 = vmul.f32 %v1653, 1.442695
      %v1659 = vpow.pop %v1658
      %v1660 = vmul.f32 %v1654, 1.442695
      %v1661 = vpow.pop %v1660
      %v1662 = vmul.f32 %v1655, 1.442695
      %v1663 = vpow.pop %v1662
      %v1664 = vadd.f32 %v1657, 1.0
      %v1665 = vadd.f32 %v1659, 1.0
      %v1666 = vadd.f32 %v1661, 1.0
      %v1667 = vadd.f32 %v1663, 1.0
      %v1668 = vrcp.pop %v1664
      %v1669 = vrcp.pop %v1665
      %v1670 = vrcp.pop %v1666
      %v1671 = vrcp.pop %v1667
      %v1672 = vmul.f32 %v1506, %v1668
      %v1673 = vmul.f32 %v1508, %v1669
      %v1674 = vmul.f32 %v1648, %v1670
      %v1675 = vmul.f32 %v1650, %v1671
      %v1676 = vld [vmem:[#allocation7] sm:$0xf]
      %v1677 = vld [vmem:[#allocation7 + $0x4] sm:$0xf]
      %v1678 = vld [vmem:[#allocation7 + $0x8] sm:$0xf]
      %v1679 = vld [vmem:[#allocation7 + $0xc] sm:$0xf]
      %v1680 = vld [vmem:[#allocation7 + $0x10] sm:$0xf]
      %v1681 = vld [vmem:[#allocation7 + $0x14] sm:$0xf]
      %v1682 = vld [vmem:[#allocation7 + $0x18] sm:$0xf]
      %v1683 = vld [vmem:[#allocation7 + $0x1c] sm:$0xf]
      %v1684 = vld [vmem:[#allocation7 + $0x20] sm:$0xf]
      %v1685 = vld [vmem:[#allocation7 + $0x24] sm:$0xf]
      %v1686 = vld [vmem:[#allocation7 + $0x28] sm:$0xf]
      %v1687 = vld [vmem:[#allocation7 + $0x2c] sm:$0xf]
      %v1688 = vld [vmem:[#allocation7 + $0x30] sm:$0xf]
      %v1689 = vld [vmem:[#allocation7 + $0x34] sm:$0xf]
      %v1690 = vld [vmem:[#allocation7 + $0x38] sm:$0xf]
      %v1691 = vld [vmem:[#allocation7 + $0x3c] sm:$0xf]
      %v1692 = vld [vmem:[#allocation7 + $0x40] sm:$0xf]
      %v1693 = vld [vmem:[#allocation7 + $0x44] sm:$0xf]
      %v1694 = vld [vmem:[#allocation7 + $0x48] sm:$0xf]
      %v1695 = vld [vmem:[#allocation7 + $0x4c] sm:$0xf]
      %v1696 = vld [vmem:[#allocation7 + $0x50] sm:$0xf]
      %v1697 = vld [vmem:[#allocation7 + $0x54] sm:$0xf]
      %v1698 = vld [vmem:[#allocation7 + $0x58] sm:$0xf]
      %v1699 = vld [vmem:[#allocation7 + $0x5c] sm:$0xf]
      %v1700 = vld [vmem:[#allocation7 + $0x60] sm:$0xf]
      %v1701 = vld [vmem:[#allocation7 + $0x64] sm:$0xf]
      %v1702 = vld [vmem:[#allocation7 + $0x68] sm:$0xf]
      %v1703 = vld [vmem:[#allocation7 + $0x6c] sm:$0xf]
      %v1704 = vld [vmem:[#allocation7 + $0x70] sm:$0xf]
      %v1705 = vld [vmem:[#allocation7 + $0x74] sm:$0xf]
      %v1706 = vld [vmem:[#allocation7 + $0x78] sm:$0xf]
      %v1707 = vld [vmem:[#allocation7 + $0x7c] sm:$0xf]
      %v1708 = vld [vmem:[#allocation7 + $0x80] sm:$0xf]
      %v1709 = vld [vmem:[#allocation7 + $0x84] sm:$0xf]
      %v1710 = vld [vmem:[#allocation7 + $0x88] sm:$0xf]
      %v1711 = vld [vmem:[#allocation7 + $0x8c] sm:$0xf]
      %v1712 = vld [vmem:[#allocation7 + $0x90] sm:$0xf]
      %v1713 = vld [vmem:[#allocation7 + $0x94] sm:$0xf]
      %v1714 = vld [vmem:[#allocation7 + $0x98] sm:$0xf]
      %v1715 = vld [vmem:[#allocation7 + $0x9c] sm:$0xf]
      %v1716 = vld [vmem:[#allocation7 + $0xa0] sm:$0xf]
      %v1717 = vld [vmem:[#allocation7 + $0xa4] sm:$0xf]
      %v1718 = vld [vmem:[#allocation7 + $0xa8] sm:$0xf]
      %v1719 = vld [vmem:[#allocation7 + $0xac] sm:$0xf]
      %v1720 = vld [vmem:[#allocation7 + $0xb0] sm:$0xf]
      %v1721 = vld [vmem:[#allocation7 + $0xb4] sm:$0xf]
      %v1722 = vld [vmem:[#allocation7 + $0xb8] sm:$0xf]
      %v1723 = vld [vmem:[#allocation7 + $0xbc] sm:$0xf]
      %v1724 = vld [vmem:[#allocation7 + $0xc0] sm:$0xf]
      %v1725 = vld [vmem:[#allocation7 + $0xc4] sm:$0xf]
      %v1726 = vld [vmem:[#allocation7 + $0xc8] sm:$0xf]
      %v1727 = vld [vmem:[#allocation7 + $0xcc] sm:$0xf]
      %v1728 = vld [vmem:[#allocation7 + $0xd0] sm:$0xf]
      %v1729 = vld [vmem:[#allocation7 + $0xd4] sm:$0xf]
      %v1730 = vld [vmem:[#allocation7 + $0xd8] sm:$0xf]
      %v1731 = vld [vmem:[#allocation7 + $0xdc] sm:$0xf]
      %v1732 = vld [vmem:[#allocation7 + $0xe0] sm:$0xf]
      %v1733 = vld [vmem:[#allocation7 + $0xe4] sm:$0xf]
      %v1734 = vld [vmem:[#allocation7 + $0xe8] sm:$0xf]
      %v1735 = vld [vmem:[#allocation7 + $0xec] sm:$0xf]
      %v1736 = vld [vmem:[#allocation7 + $0xf0] sm:$0xf]
      %v1737 = vld [vmem:[#allocation7 + $0xf4] sm:$0xf]
      %v1738 = vld [vmem:[#allocation7 + $0xf8] sm:$0xf]
      %v1739 = vld [vmem:[#allocation7 + $0xfc] sm:$0xf]
      %v1740 = vunpack.c.l.bf16 %v1676
      %v1741 = vunpack.c.l.bf16 %v1677
      %v1742 = vunpack.c.l.bf16 %v1678
      %v1743 = vunpack.c.l.bf16 %v1679
      %v1744 = vunpack.c.l.bf16 %v1680
      %v1745 = vunpack.c.l.bf16 %v1681
      %v1746 = vunpack.c.l.bf16 %v1682
      %v1747 = vunpack.c.l.bf16 %v1683
      %v1748 = vunpack.c.l.bf16 %v1684
      %v1749 = vunpack.c.l.bf16 %v1685
      %v1750 = vunpack.c.l.bf16 %v1686
      %v1751 = vunpack.c.l.bf16 %v1687
      %v1752 = vunpack.c.l.bf16 %v1688
      %v1753 = vunpack.c.l.bf16 %v1689
      %v1754 = vunpack.c.l.bf16 %v1690
      %v1755 = vunpack.c.l.bf16 %v1691
      %v1756 = vunpack.c.l.bf16 %v1692
      %v1757 = vunpack.c.l.bf16 %v1693
      %v1758 = vunpack.c.l.bf16 %v1694
      %v1759 = vunpack.c.l.bf16 %v1695
      %v1760 = vunpack.c.l.bf16 %v1696
      %v1761 = vunpack.c.l.bf16 %v1697
      %v1762 = vunpack.c.l.bf16 %v1698
      %v1763 = vunpack.c.l.bf16 %v1699
      %v1764 = vunpack.c.l.bf16 %v1700
      %v1765 = vunpack.c.l.bf16 %v1701
      %v1766 = vunpack.c.l.bf16 %v1702
      %v1767 = vunpack.c.l.bf16 %v1703
      %v1768 = vunpack.c.l.bf16 %v1704
      %v1769 = vunpack.c.l.bf16 %v1705
      %v1770 = vunpack.c.l.bf16 %v1706
      %v1771 = vunpack.c.l.bf16 %v1707
      %v1772 = vunpack.c.l.bf16 %v1708
      %v1773 = vunpack.c.l.bf16 %v1709
      %v1774 = vunpack.c.l.bf16 %v1710
      %v1775 = vunpack.c.l.bf16 %v1711
      %v1776 = vunpack.c.l.bf16 %v1712
      %v1777 = vunpack.c.l.bf16 %v1713
      %v1778 = vunpack.c.l.bf16 %v1714
      %v1779 = vunpack.c.l.bf16 %v1715
      %v1780 = vunpack.c.l.bf16 %v1716
      %v1781 = vunpack.c.l.bf16 %v1717
      %v1782 = vunpack.c.l.bf16 %v1718
      %v1783 = vunpack.c.l.bf16 %v1719
      %v1784 = vunpack.c.l.bf16 %v1720
      %v1785 = vunpack.c.l.bf16 %v1721
      %v1786 = vunpack.c.l.bf16 %v1722
      %v1787 = vunpack.c.l.bf16 %v1723
      %v1788 = vunpack.c.l.bf16 %v1724
      %v1789 = vunpack.c.l.bf16 %v1725
      %v1790 = vunpack.c.l.bf16 %v1726
      %v1791 = vunpack.c.l.bf16 %v1727
      %v1792 = vunpack.c.l.bf16 %v1728
      %v1793 = vunpack.c.l.bf16 %v1729
      %v1794 = vunpack.c.l.bf16 %v1730
      %v1795 = vunpack.c.l.bf16 %v1731
      %v1796 = vunpack.c.l.bf16 %v1732
      %v1797 = vunpack.c.l.bf16 %v1733
      %v1798 = vunpack.c.l.bf16 %v1734
      %v1799 = vunpack.c.l.bf16 %v1735
      %v1800 = vunpack.c.l.bf16 %v1736
      %v1801 = vunpack.c.l.bf16 %v1737
      %v1802 = vunpack.c.l.bf16 %v1738
      %v1803 = vunpack.c.l.bf16 %v1739
      %v1804 = vld [vmem:[%s8] sm:$0x1]
      %v1806 = vlaneseq
      %v1807 = vshrl.u32 %v1806, 7
      %v1808 = vsub.s32 0, %v1807
      %v1809 = vrot.slane %v1804, %v1808
      %1811 = vmatprep.subr.mxu0 0.0
      %1812 = vmatpush1.msra.mxu0 %v1740
      %1813 = vmatprep.subr.mxu0 0.0
      %1814 = vmatpush1.msra.mxu0 %v1741
      %1815 = vmatprep.subr.mxu0 0.0
      %1816 = vmatpush1.msra.mxu0 %v1742
      %1817 = vmatprep.subr.mxu0 0.0
      %1818 = vmatpush1.msra.mxu0 %v1743
      %1819 = vmatprep.subr.mxu0 0.0
      %1820 = vmatpush1.msra.mxu0 %v1744
      %1821 = vmatprep.subr.mxu0 0.0
      %1822 = vmatpush1.msra.mxu0 %v1745
      %1823 = vmatprep.subr.mxu0 0.0
      %1824 = vmatpush1.msra.mxu0 %v1746
      %1825 = vmatprep.subr.mxu0 0.0
      %1826 = vmatpush1.msra.mxu0 %v1747
      %1827 = vmatprep.subr.mxu0 0.0
      %1828 = vmatpush1.msra.mxu0 %v1748
      %1829 = vmatprep.subr.mxu0 0.0
      %1830 = vmatpush1.msra.mxu0 %v1749
      %1831 = vmatprep.subr.mxu0 0.0
      %1832 = vmatpush1.msra.mxu0 %v1750
      %1833 = vmatprep.subr.mxu0 0.0
      %1834 = vmatpush1.msra.mxu0 %v1751
      %1835 = vmatprep.subr.mxu0 0.0
      %1836 = vmatpush1.msra.mxu0 %v1752
      %1837 = vmatprep.subr.mxu0 0.0
      %1838 = vmatpush1.msra.mxu0 %v1753
      %1839 = vmatprep.subr.mxu0 0.0
      %1840 = vmatpush1.msra.mxu0 %v1754
      %1841 = vmatprep.subr.mxu0 0.0
      %1842 = vmatpush1.msra.mxu0 %v1755
      %1843 = vmatprep.subr.mxu0 0.0
      %1844 = vmatpush1.msra.mxu0 %v1756
      %1845 = vmatprep.subr.mxu0 0.0
      %1846 = vmatpush1.msra.mxu0 %v1757
      %1847 = vmatprep.subr.mxu0 0.0
      %1848 = vmatpush1.msra.mxu0 %v1758
      %1849 = vmatprep.subr.mxu0 0.0
      %1850 = vmatpush1.msra.mxu0 %v1759
      %1851 = vmatprep.subr.mxu0 0.0
      %1852 = vmatpush1.msra.mxu0 %v1760
      %1853 = vmatprep.subr.mxu0 0.0
      %1854 = vmatpush1.msra.mxu0 %v1761
      %1855 = vmatprep.subr.mxu0 0.0
      %1856 = vmatpush1.msra.mxu0 %v1762
      %1857 = vmatprep.subr.mxu0 0.0
      %1858 = vmatpush1.msra.mxu0 %v1763
      %1859 = vmatprep.subr.mxu0 0.0
      %1860 = vmatpush1.msra.mxu0 %v1764
      %1861 = vmatprep.subr.mxu0 0.0
      %1862 = vmatpush1.msra.mxu0 %v1765
      %1863 = vmatprep.subr.mxu0 0.0
      %1864 = vmatpush1.msra.mxu0 %v1766
      %1865 = vmatprep.subr.mxu0 0.0
      %1866 = vmatpush1.msra.mxu0 %v1767
      %1867 = vmatprep.subr.mxu0 0.0
      %1868 = vmatpush1.msra.mxu0 %v1768
      %1869 = vmatprep.subr.mxu0 0.0
      %1870 = vmatpush1.msra.mxu0 %v1769
      %1871 = vmatprep.subr.mxu0 0.0
      %1872 = vmatpush1.msra.mxu0 %v1770
      %1873 = vmatprep.subr.mxu0 0.0
      %1874 = vmatpush1.msra.mxu0 %v1771
      %1875 = vmatprep.mubr.f32.mxu0 %v1673
      %1876 = vmatmul.mubr.f32.gmra.mrb[0].mxu0 %v1672
      %v1877 = vpop.f32.mrb[0].mxu0
      %v1878 = vadd.f32 %v1809, %v1877
      %v1879 = vpop.f32.mrb[0].mxu0
      %1880 = vdwg.mxu0
      %1881 = vmatprep.subr.mxu0 0.0
      %1882 = vmatpush1.msra.mxu0 %v1772
      %1883 = vmatprep.subr.mxu0 0.0
      %1884 = vmatpush1.msra.mxu0 %v1773
      %1885 = vmatprep.subr.mxu0 0.0
      %1886 = vmatpush1.msra.mxu0 %v1774
      %1887 = vmatprep.subr.mxu0 0.0
      %1888 = vmatpush1.msra.mxu0 %v1775
      %1889 = vmatprep.subr.mxu0 0.0
      %1890 = vmatpush1.msra.mxu0 %v1776
      %1891 = vmatprep.subr.mxu0 0.0
      %1892 = vmatpush1.msra.mxu0 %v1777
      %1893 = vmatprep.subr.mxu0 0.0
      %1894 = vmatpush1.msra.mxu0 %v1778
      %1895 = vmatprep.subr.mxu0 0.0
      %1896 = vmatpush1.msra.mxu0 %v1779
      %1897 = vmatprep.subr.mxu0 0.0
      %1898 = vmatpush1.msra.mxu0 %v1780
      %1899 = vmatprep.subr.mxu0 0.0
      %1900 = vmatpush1.msra.mxu0 %v1781
      %1901 = vmatprep.subr.mxu0 0.0
      %1902 = vmatpush1.msra.mxu0 %v1782
      %1903 = vmatprep.subr.mxu0 0.0
      %1904 = vmatpush1.msra.mxu0 %v1783
      %1905 = vmatprep.subr.mxu0 0.0
      %1906 = vmatpush1.msra.mxu0 %v1784
      %1907 = vmatprep.subr.mxu0 0.0
      %1908 = vmatpush1.msra.mxu0 %v1785
      %1909 = vmatprep.subr.mxu0 0.0
      %1910 = vmatpush1.msra.mxu0 %v1786
      %1911 = vmatprep.subr.mxu0 0.0
      %1912 = vmatpush1.msra.mxu0 %v1787
      %1913 = vmatprep.subr.mxu0 0.0
      %1914 = vmatpush1.msra.mxu0 %v1788
      %1915 = vmatprep.subr.mxu0 0.0
      %1916 = vmatpush1.msra.mxu0 %v1789
      %1917 = vmatprep.subr.mxu0 0.0
      %1918 = vmatpush1.msra.mxu0 %v1790
      %1919 = vmatprep.subr.mxu0 0.0
      %1920 = vmatpush1.msra.mxu0 %v1791
      %1921 = vmatprep.subr.mxu0 0.0
      %1922 = vmatpush1.msra.mxu0 %v1792
      %1923 = vmatprep.subr.mxu0 0.0
      %1924 = vmatpush1.msra.mxu0 %v1793
      %1925 = vmatprep.subr.mxu0 0.0
      %1926 = vmatpush1.msra.mxu0 %v1794
      %1927 = vmatprep.subr.mxu0 0.0
      %1928 = vmatpush1.msra.mxu0 %v1795
      %1929 = vmatprep.subr.mxu0 0.0
      %1930 = vmatpush1.msra.mxu0 %v1796
      %1931 = vmatprep.subr.mxu0 0.0
      %1932 = vmatpush1.msra.mxu0 %v1797
      %1933 = vmatprep.subr.mxu0 0.0
      %1934 = vmatpush1.msra.mxu0 %v1798
      %1935 = vmatprep.subr.mxu0 0.0
      %1936 = vmatpush1.msra.mxu0 %v1799
      %1937 = vmatprep.subr.mxu0 0.0
      %1938 = vmatpush1.msra.mxu0 %v1800
      %1939 = vmatprep.subr.mxu0 0.0
      %1940 = vmatpush1.msra.mxu0 %v1801
      %1941 = vmatprep.subr.mxu0 0.0
      %1942 = vmatpush1.msra.mxu0 %v1802
      %1943 = vmatprep.subr.mxu0 0.0
      %1944 = vmatpush1.msra.mxu0 %v1803
      %1945 = vmatprep.mubr.f32.mxu0 %v1675
      %1946 = vmatmul.mubr.f32.gmra.mrb[0].mxu0 %v1674
      %v1947 = vpop.f32.mrb[0].mxu0
      %v1948 = vadd.f32 %v1878, %v1947
      %v1949 = vpop.f32.mrb[0].mxu0
      %1950 = vdwg.mxu0
      %1951 = vst [vmem:[%s10] sm:$0x3] %v1948
    $region61: #{mv_aggregate_forward.1} parent=1 // pred_fallthru
      _
    // Predicated region
    $region62: #{mv_aggregate_forward.1} parent=1 // pred_check
      _
    $region63: #{mv_aggregate_forward.1} parent=1 // pred_check_branch
      %1953 = sbr.rel (0) target = $region65
    $region64: #{mv_aggregate_forward.1} parent=1 // pred_region
      %s1955 = ssub.s32 64, 64
      %1956 = vsyncadd [#allocation4], %s1955
      %s1958 = sshll.u32 [#allocation8], 4
      %s1959 = int_to_ptr.vmem [resolvable:$true] %s1958
      %1961 = dma.vmem_to_hbm [thread:$0]  %s1959, 64, %s9, [#allocation4]
    $region65: #{mv_aggregate_forward.1} parent=1 // pred_fallthru
      _
    // Predicated region
    $region66: #{mv_aggregate_forward.1} parent=1 // pred_check
      _
    $region67: #{mv_aggregate_forward.1} parent=1 // pred_check_branch
      %1963 = sbr.rel (0) target = $region69
    $region68: #{mv_aggregate_forward.1} parent=1 // pred_region
      _
    $region69: #{mv_aggregate_forward.1} parent=1 // pred_fallthru
      _
    // Predicated region
    $region70: #{mv_aggregate_forward.1} parent=1 // pred_check
      _
    $region71: #{mv_aggregate_forward.1} parent=1 // pred_check_branch
      %1965 = sbr.rel (0) target = $region73
    $region72: #{mv_aggregate_forward.1} parent=1 // pred_region
      %1966 = dma.done [#allocation4], 64
    $region73: #{mv_aggregate_forward.1} parent=1 // pred_fallthru
      _
    // Predicated region
    $region74: #{mv_aggregate_forward.1} parent=1 // pred_check
      _
    $region75: #{mv_aggregate_forward.1} parent=1 // pred_check_branch
      %1968 = sbr.rel (0) target = $region77
    $region76: #{mv_aggregate_forward.1} parent=1 // pred_region
      _
    $region77: #{mv_aggregate_forward.1} parent=1 // pred_fallthru
      _
    %1969 = vsyncpa [#allocation3], 1
    %1970 = vsyncpa [#allocation6], 1
    %1971 = vsyncpa [#allocation4], 1

</llo_original>
